<compile_context>
chip_gen: v7x
topology: tpu7x:2x2x1
jax: 0.10.0
libtpu: 0.0.40
codegen_flags: <defaults>
</compile_context>

<pallas_src>
import functools

import jax
import jax.numpy as jnp
from jax.experimental import pallas as pl
from jax.experimental.pallas import tpu as pltpu

FP = 128   # lane-dense feature padding (all F_in / F_out padded to 128)
TM = 128   # output row tile


def _fused_sage_kernel(a_ref, x_ref, w_ref, b_ref, o_ref, h_a, h_b,
                       *, tm, n_layers, a_resident):
    """grid = (layer, row_tile). H is carried between layers in VMEM scratch."""
    l = pl.program_id(0)
    i = pl.program_id(1)
    row0 = pl.multiple_of(i * tm, tm)

    # Bootstrap: copy the (padded, bf16) node features into the ping buffer once.
    @pl.when(jnp.logical_and(l == 0, i == 0))
    def _():
        h_a[...] = x_ref[...]

    # Row slab of A for this output tile.
    if a_resident:
        a_slab = a_ref[pl.ds(row0, tm), :]       # (tm, N_pad) bf16, A loaded once
    else:
        a_slab = a_ref[...]                      # (tm, N_pad) bf16, streamed slab

    w = w_ref[0]                                 # (2*FP, FP) bf16  [Ws ; Wn]
    b = b_ref[0]                                 # (1, FP) f32

    def do_layer(src_ref, dst_ref):
        h_full = src_ref[...]                    # (N_pad, FP) bf16 : previous-layer H
        h_self = src_ref[pl.ds(row0, tm), :]     # (tm, FP)  bf16
        # mean aggregation over in-neighbors -> MXU, f32 accumulation
        agg = jnp.dot(a_slab, h_full, preferred_element_type=jnp.float32)
        # merged self/neighbor matmul: K = 2*FP fills the MXU better
        combined = jnp.concatenate([h_self, agg.astype(jnp.bfloat16)], axis=-1)
        out = jnp.dot(combined, w, preferred_element_type=jnp.float32) + b
        out = jnp.where(l < n_layers - 1, jnp.maximum(out, 0.0), out)
        # TODO(synk): dropout is eval-mode identity (no mask applied here).
        dst_ref[pl.ds(row0, tm), :] = out.astype(dst_ref.dtype)
        # Lane-dense (tm, 128) store every visit; the last layer's write wins.
        o_ref[...] = out.astype(o_ref.dtype)

    parity = l % 2

    @pl.when(parity == 0)
    def _():
        do_layer(h_a, h_b)      # even layers read h_a, write h_b

    @pl.when(parity == 1)
    def _():
        do_layer(h_b, h_a)      # odd layers read h_b, write h_a


def _pad2(x, rows, cols):
    return jnp.pad(x, ((0, rows - x.shape[0]), (0, cols - x.shape[1])))


def pack_params(params, fp=FP):
    """Stack per-layer [W_self; W_neigh] (bf16) and biases (f32), padded to 128."""
    w_blocks, b_blocks = [], []
    for w_self, w_neigh, bias in params:
        ws = _pad2(w_self, fp, fp)
        wn = _pad2(w_neigh, fp, fp)
        w_blocks.append(jnp.concatenate([ws, wn], axis=0))          # (2fp, fp)
        b_blocks.append(_pad2(jnp.asarray(bias).reshape(1, -1), 1, fp))
    w_all = jnp.stack(w_blocks).astype(jnp.bfloat16)                # (L, 2fp, fp)
    b_all = jnp.stack(b_blocks).astype(jnp.float32)[:, None, :].reshape(
        len(params), 1, fp)                                         # (L, 1, fp)
    return w_all, b_all


def sage_forward(a, x, params):
    """Fused 3-layer SAGE forward. `params` is a list of (w_self, w_neigh, bias)."""
    n = a.shape[0]
    n_layers = len(params)
    n_classes = params[-1][0].shape[1]
    n_pad = max(int(pl.cdiv(n, TM)) * TM, TM)

    a_p = _pad2(a, n_pad, n_pad).astype(jnp.bfloat16)     # zero-padded rows/cols
    x_p = _pad2(x, n_pad, FP).astype(jnp.bfloat16)
    w_all, b_all = pack_params(params)

    # Keep A fully VMEM-resident (fetched once for all 3 layers) when small;
    # otherwise stream (TM, N_pad) row slabs (double-buffered by BlockSpec).
    a_resident = (n_pad * n_pad * 2) <= 16 * 1024 * 1024
    if a_resident:
        a_spec = pl.BlockSpec((n_pad, n_pad), lambda l, i: (0, 0))
    else:
        a_spec = pl.BlockSpec((TM, n_pad), lambda l, i: (i, 0))

    out = pl.pallas_call(
        functools.partial(_fused_sage_kernel, tm=TM, n_layers=n_layers,
                          a_resident=a_resident),
        out_shape=jax.ShapeDtypeStruct((n_pad, FP), jnp.float32),
        grid_spec=pltpu.PrefetchScalarGridSpec(
            num_scalar_prefetch=0,
            grid=(n_layers, n_pad // TM),
            in_specs=[
                a_spec,                                                  # A
                pl.BlockSpec((n_pad, FP), lambda l, i: (0, 0)),          # X (resident)
                pl.BlockSpec((1, 2 * FP, FP), lambda l, i: (l, 0, 0)),   # [Ws;Wn] per layer
                pl.BlockSpec((1, 1, FP), lambda l, i: (l, 0, 0)),        # bias per layer
            ],
            out_specs=pl.BlockSpec((TM, FP), lambda l, i: (i, 0)),
            scratch_shapes=[
                pltpu.VMEM((n_pad, FP), jnp.bfloat16),   # H ping
                pltpu.VMEM((n_pad, FP), jnp.bfloat16),   # H pong
            ],
        ),
        compiler_params=pltpu.CompilerParams(
            # Layer axis carries H through scratch and every row tile of layer l
            # reads the full H written by layer l-1 -> both axes must be serial.
            dimension_semantics=("arbitrary", "arbitrary"),
            vmem_limit_bytes=48 * 1024 * 1024,   # fits v7x's 64 MiB physical VMEM
        ),
    )(a_p, x_p, w_all, b_all)

    return out[:n, :n_classes]


def reference_forward(a, x, params):
    """Pure-JAX reference mirroring the kernel's precision path (bf16 in, f32 acc)."""
    a_f = a.astype(jnp.bfloat16).astype(jnp.float32)
    h = x.astype(jnp.bfloat16)
    n_layers = len(params)
    for l, (w_self, w_neigh, bias) in enumerate(params):
        h32 = h.astype(jnp.float32)
        agg = (a_f @ h32).astype(jnp.bfloat16).astype(jnp.float32)
        ws = w_self.astype(jnp.bfloat16).astype(jnp.float32)
        wn = w_neigh.astype(jnp.bfloat16).astype(jnp.float32)
        out = h32 @ ws + agg @ wn + jnp.asarray(bias).reshape(1, -1)
        if l != n_layers - 1:
            out = jnp.maximum(out, 0.0)
            h = out.astype(jnp.bfloat16)
        else:
            h = out
    return h


def init_params(key, in_feats, n_hidden, n_classes):
    dims = [(in_feats, n_hidden), (n_hidden, n_hidden), (n_hidden, n_classes)]
    params = []
    for f_in, f_out in dims:
        key, k1, k2 = jax.random.split(key, 3)
        scale = 1.0 / jnp.sqrt(jnp.float32(f_in))
        w_self = jax.random.normal(k1, (f_in, f_out), jnp.float32) * scale
        w_neigh = jax.random.normal(k2, (f_in, f_out), jnp.float32) * scale
        bias = jnp.zeros((1, f_out), jnp.float32)
        params.append((w_self, w_neigh, bias))
    return params


def build_mean_adjacency(key, n_nodes, edge_prob=0.15):
    """Dense row-normalized adjacency (DGL 'mean' aggregation matrix)."""
    mask = jax.random.bernoulli(key, edge_prob, (n_nodes, n_nodes)).astype(jnp.float32)
    # Ensure every node has at least one in-neighbor: add a ring edge (i-1 -> i).
    ring = jnp.roll(jnp.eye(n_nodes, dtype=jnp.float32), shift=1, axis=1)
    adj = jnp.clip(mask + ring, 0.0, 1.0)
    deg = jnp.maximum(adj.sum(axis=1, keepdims=True), 1.0)
    return adj / deg


if __name__ == "__main__":
    N_NODES = 256
    IN_FEATS = 16
    N_HIDDEN = 32
    N_CLASSES = 8

    key = jax.random.PRNGKey(0)
    k_adj, k_x, k_params = jax.random.split(key, 3)

    a = build_mean_adjacency(k_adj, N_NODES)                        # [N, N]
    x = jax.random.normal(k_x, (N_NODES, IN_FEATS), jnp.float32)    # [N, F_in]
    params = init_params(k_params, IN_FEATS, N_HIDDEN, N_CLASSES)

    fwd = jax.jit(lambda a_, x_: sage_forward(a_, x_, params))
    out = jax.block_until_ready(fwd(a, x))

    assert out.shape == (N_NODES, N_CLASSES)
    assert bool(jnp.all(jnp.isfinite(out)))

    ref = reference_forward(a, x, params)
    max_err = float(jnp.max(jnp.abs(out - ref)))
    assert jnp.allclose(out, ref, atol=1e-2, rtol=1e-2), f"max_err={max_err}"

    print("KERNEL_OK")
</pallas_src>

<mosaic_0001>
module attributes {stable_mosaic.version = 11 : i64} {
  func.func @_fused_sage_kernel(%arg0: i32, %arg1: i32, %arg2: memref<256x256xbf16, #tpu.memory_space<vmem>>, %arg3: memref<256x128xbf16, #tpu.memory_space<vmem>>, %arg4: memref<1x256x128xbf16, #tpu.memory_space<vmem>>, %arg5: memref<1x1x128xf32, #tpu.memory_space<vmem>>, %arg6: memref<128x128xf32, #tpu.memory_space<vmem>>, %arg7: memref<256x128xbf16, #tpu.memory_space<vmem>>, %arg8: memref<256x128xbf16, #tpu.memory_space<vmem>>) attributes {dimension_semantics = [#tpu.dimension_semantics<arbitrary>, #tpu.dimension_semantics<arbitrary>], iteration_bounds = array<i64: 3, 2>, scalar_prefetch = 0 : i64, scratch_operands = 2 : i64, tpu.core_type = #tpu.core_type<tc>, window_params = [{pipeline_mode = #tpu.pipeline_mode<synchronous>, transform_indices = @transform_0, window_bounds = array<i64: 256, 256>}, {pipeline_mode = #tpu.pipeline_mode<synchronous>, transform_indices = @transform_1, window_bounds = array<i64: 256, 128>}, {transform_indices = @transform_2, window_bounds = array<i64: 1, 256, 128>}, {transform_indices = @transform_3, window_bounds = array<i64: 1, 1, 128>}, {transform_indices = @transform_4, window_bounds = array<i64: 128, 128>}]} {
    %c128_i32 = arith.constant 128 : i32
    %0 = arith.muli %arg1, %c128_i32 : i32
    %1 = tpu.assume_multiple %0, 128 : i32
    %c0_i32 = arith.constant 0 : i32
    %2 = arith.cmpi eq, %arg0, %c0_i32 : i32
    %c0_i32_0 = arith.constant 0 : i32
    %3 = arith.cmpi eq, %arg1, %c0_i32_0 : i32
    %4 = arith.andi %2, %3 : i1
    %5 = arith.extui %4 : i1 to i32
    %c0_i32_1 = arith.constant 0 : i32
    %6 = arith.cmpi ne, %5, %c0_i32_1 : i32
    scf.if %6 {
      %c0_16 = arith.constant 0 : index
      %c0_17 = arith.constant 0 : index
      %29 = vector.load %arg3[%c0_16, %c0_17] : memref<256x128xbf16, #tpu.memory_space<vmem>>, vector<256x128xbf16>
      %c0_18 = arith.constant 0 : index
      %c0_19 = arith.constant 0 : index
      %30 = vector.load %arg7[%c0_18, %c0_19] : memref<256x128xbf16, #tpu.memory_space<vmem>>, vector<256x128xbf16>
      tpu.vector_store %arg7[%c0_18, %c0_19], %29 {strides = array<i32>} : memref<256x128xbf16, #tpu.memory_space<vmem>>, vector<256x128xbf16>,
    } else {
    }
    %7 = arith.index_cast %1 : i32 to index
    %c0 = arith.constant 0 : index
    %8 = vector.load %arg2[%7, %c0] : memref<256x256xbf16, #tpu.memory_space<vmem>>, vector<128x256xbf16>
    %c0_2 = arith.constant 0 : index
    %c0_3 = arith.constant 0 : index
    %c0_4 = arith.constant 0 : index
    %9 = vector.load %arg4[%c0_2, %c0_3, %c0_4] : memref<1x256x128xbf16, #tpu.memory_space<vmem>>, vector<1x256x128xbf16>
    %10 = vector.shape_cast %9 : vector<1x256x128xbf16> to vector<256x128xbf16>
    %c0_5 = arith.constant 0 : index
    %c0_6 = arith.constant 0 : index
    %c0_7 = arith.constant 0 : index
    %11 = vector.load %arg5[%c0_5, %c0_6, %c0_7] : memref<1x1x128xf32, #tpu.memory_space<vmem>>, vector<1x1x128xf32>
    %12 = vector.shape_cast %11 : vector<1x1x128xf32> to vector<1x128xf32>
    %c2_i32 = arith.constant 2 : i32
    %c0_i32_8 = arith.constant 0 : i32
    %13 = arith.cmpi eq, %c2_i32, %c0_i32_8 : i32
    %c1_i32 = arith.constant 1 : i32
    %14 = arith.select %13, %c1_i32, %c2_i32 : i32
    %15 = arith.remsi %arg0, %14 : i32
    %c0_i32_9 = arith.constant 0 : i32
    %16 = arith.cmpi ne, %15, %c0_i32_9 : i32
    %c0_i32_10 = arith.constant 0 : i32
    %17 = arith.cmpi slt, %15, %c0_i32_10 : i32
    %c0_i32_11 = arith.constant 0 : i32
    %18 = arith.cmpi slt, %14, %c0_i32_11 : i32
    %19 = arith.xori %17, %18 : i1
    %20 = arith.andi %19, %16 : i1
    %21 = arith.addi %15, %14 : i32
    %22 = arith.select %20, %21, %15 : i32
    %c0_i32_12 = arith.constant 0 : i32
    %23 = arith.cmpi eq, %22, %c0_i32_12 : i32
    %24 = arith.extui %23 : i1 to i32
    %c0_i32_13 = arith.constant 0 : i32
    %25 = arith.cmpi ne, %24, %c0_i32_13 : i32
    scf.if %25 {
      %c0_16 = arith.constant 0 : index
      %c0_17 = arith.constant 0 : index
      %29 = vector.load %arg7[%c0_16, %c0_17] : memref<256x128xbf16, #tpu.memory_space<vmem>>, vector<256x128xbf16>
      %30 = arith.index_cast %1 : i32 to index
      %c0_18 = arith.constant 0 : index
      %31 = vector.load %arg7[%30, %c0_18] : memref<256x128xbf16, #tpu.memory_space<vmem>>, vector<128x128xbf16>
      %cst = arith.constant dense<0.000000e+00> : vector<128x128xf32>
      %32 = tpu.matmul %8, %29, %cst {dimension_numbers = #tpu.dot_dimension_numbers<[1], [0], [0], [1], [0, 0, 1, 1], [], []>} : vector<128x256xbf16>, vector<256x128xbf16>, vector<128x128xf32> -> vector<128x128xf32>
      %33 = arith.truncf %32 : vector<128x128xf32> to vector<128x128xbf16>
      %34 = tpu.concatenate %31, %33 in 1 : vector<128x128xbf16>, vector<128x128xbf16> -> vector<128x256xbf16>
      %cst_19 = arith.constant dense<0.000000e+00> : vector<128x128xf32>
      %35 = tpu.matmul %34, %10, %cst_19 {dimension_numbers = #tpu.dot_dimension_numbers<[1], [0], [0], [1], [0, 0, 1, 1], [], []>} : vector<128x256xbf16>, vector<256x128xbf16>, vector<128x128xf32> -> vector<128x128xf32>
      %36 = vector.broadcast %12 : vector<1x128xf32> to vector<128x128xf32>
      %37 = arith.addf %35, %36 : vector<128x128xf32>
      %c2_i32_20 = arith.constant 2 : i32
      %38 = arith.cmpi slt, %arg0, %c2_i32_20 : i32
      %cst_21 = arith.constant 0.000000e+00 : f32
      %39 = vector.broadcast %cst_21 : f32 to vector<128x128xf32>
      %40 = arith.maximumf %37, %39 : vector<128x128xf32>
      %41 = arith.select %38, %40, %37 : vector<128x128xf32>
      %42 = arith.truncf %41 : vector<128x128xf32> to vector<128x128xbf16>
      %43 = arith.index_cast %1 : i32 to index
      %c0_22 = arith.constant 0 : index
      %44 = vector.load %arg8[%43, %c0_22] : memref<256x128xbf16, #tpu.memory_space<vmem>>, vector<128x128xbf16>
      tpu.vector_store %arg8[%43, %c0_22], %42 {strides = array<i32>} : memref<256x128xbf16, #tpu.memory_space<vmem>>, vector<128x128xbf16>,
      %c0_23 = arith.constant 0 : index
      %c0_24 = arith.constant 0 : index
      %45 = vector.load %arg6[%c0_23, %c0_24] : memref<128x128xf32, #tpu.memory_space<vmem>>, vector<128x128xf32>
      tpu.vector_store %arg6[%c0_23, %c0_24], %41 {strides = array<i32>} : memref<128x128xf32, #tpu.memory_space<vmem>>, vector<128x128xf32>,
    } else {
    }
    %c1_i32_14 = arith.constant 1 : i32
    %26 = arith.cmpi eq, %22, %c1_i32_14 : i32
    %27 = arith.extui %26 : i1 to i32
    %c0_i32_15 = arith.constant 0 : i32
    %28 = arith.cmpi ne, %27, %c0_i32_15 : i32
    scf.if %28 {
      %c0_16 = arith.constant 0 : index
      %c0_17 = arith.constant 0 : index
      %29 = vector.load %arg8[%c0_16, %c0_17] : memref<256x128xbf16, #tpu.memory_space<vmem>>, vector<256x128xbf16>
      %30 = arith.index_cast %1 : i32 to index
      %c0_18 = arith.constant 0 : index
      %31 = vector.load %arg8[%30, %c0_18] : memref<256x128xbf16, #tpu.memory_space<vmem>>, vector<128x128xbf16>
      %cst = arith.constant dense<0.000000e+00> : vector<128x128xf32>
      %32 = tpu.matmul %8, %29, %cst {dimension_numbers = #tpu.dot_dimension_numbers<[1], [0], [0], [1], [0, 0, 1, 1], [], []>} : vector<128x256xbf16>, vector<256x128xbf16>, vector<128x128xf32> -> vector<128x128xf32>
      %33 = arith.truncf %32 : vector<128x128xf32> to vector<128x128xbf16>
      %34 = tpu.concatenate %31, %33 in 1 : vector<128x128xbf16>, vector<128x128xbf16> -> vector<128x256xbf16>
      %cst_19 = arith.constant dense<0.000000e+00> : vector<128x128xf32>
      %35 = tpu.matmul %34, %10, %cst_19 {dimension_numbers = #tpu.dot_dimension_numbers<[1], [0], [0], [1], [0, 0, 1, 1], [], []>} : vector<128x256xbf16>, vector<256x128xbf16>, vector<128x128xf32> -> vector<128x128xf32>
      %36 = vector.broadcast %12 : vector<1x128xf32> to vector<128x128xf32>
      %37 = arith.addf %35, %36 : vector<128x128xf32>
      %c2_i32_20 = arith.constant 2 : i32
      %38 = arith.cmpi slt, %arg0, %c2_i32_20 : i32
      %cst_21 = arith.constant 0.000000e+00 : f32
      %39 = vector.broadcast %cst_21 : f32 to vector<128x128xf32>
      %40 = arith.maximumf %37, %39 : vector<128x128xf32>
      %41 = arith.select %38, %40, %37 : vector<128x128xf32>
      %42 = arith.truncf %41 : vector<128x128xf32> to vector<128x128xbf16>
      %43 = arith.index_cast %1 : i32 to index
      %c0_22 = arith.constant 0 : index
      %44 = vector.load %arg7[%43, %c0_22] : memref<256x128xbf16, #tpu.memory_space<vmem>>, vector<128x128xbf16>
      tpu.vector_store %arg7[%43, %c0_22], %42 {strides = array<i32>} : memref<256x128xbf16, #tpu.memory_space<vmem>>, vector<128x128xbf16>,
      %c0_23 = arith.constant 0 : index
      %c0_24 = arith.constant 0 : index
      %45 = vector.load %arg6[%c0_23, %c0_24] : memref<128x128xf32, #tpu.memory_space<vmem>>, vector<128x128xf32>
      tpu.vector_store %arg6[%c0_23, %c0_24], %41 {strides = array<i32>} : memref<128x128xf32, #tpu.memory_space<vmem>>, vector<128x128xf32>,
    } else {
    }
    return
  }
  func.func @transform_0(%arg0: i32, %arg1: i32) -> (i32, i32) {
    %c0_i32 = arith.constant 0 : i32
    %c0_i32_0 = arith.constant 0 : i32
    %c0_i32_1 = arith.constant 0 : i32
    return %c0_i32, %c0_i32_0 : i32, i32
  }
  func.func @transform_1(%arg0: i32, %arg1: i32) -> (i32, i32) {
    %c0_i32 = arith.constant 0 : i32
    %c0_i32_0 = arith.constant 0 : i32
    %c0_i32_1 = arith.constant 0 : i32
    return %c0_i32, %c0_i32_0 : i32, i32
  }
  func.func @transform_2(%arg0: i32, %arg1: i32) -> (i32, i32, i32) {
    %c0_i32 = arith.constant 0 : i32
    %c0_i32_0 = arith.constant 0 : i32
    %c0_i32_1 = arith.constant 0 : i32
    return %arg0, %c0_i32, %c0_i32_0 : i32, i32, i32
  }
  func.func @transform_3(%arg0: i32, %arg1: i32) -> (i32, i32, i32) {
    %c0_i32 = arith.constant 0 : i32
    %c0_i32_0 = arith.constant 0 : i32
    %c0_i32_1 = arith.constant 0 : i32
    return %arg0, %c0_i32, %c0_i32_0 : i32, i32, i32
  }
  func.func @transform_4(%arg0: i32, %arg1: i32) -> (i32, i32) {
    %c0_i32 = arith.constant 0 : i32
    %c0_i32_0 = arith.constant 0 : i32
    return %arg1, %c0_i32 : i32, i32
  }
}

</mosaic_0001>

<llo_original>
// kernel: _lambda_.1
$region0: #{_lambda_.1}
  #allocation0 [shape = 'u32[]', space=smem, size = 0x4, offset = 0x4, fixed_abs, tag = 'smem constant byte address 0x4 - core index']
  #allocation1 [shape = 'u32[144,128]{1,0:T(1,128)}', space=vmem, size = 0x12000, scoped, tag = 'internal scratch']
  #allocation2 [shape = 'bf16[256,128]{1,0:T(16,128)(2,1)}', space=vmem, size = 0x10000, scoped, tag = 'scratch operand']
  #allocation3 [shape = 'bf16[256,128]{1,0:T(16,128)(2,1)}', space=vmem, size = 0x10000, scoped, tag = 'scratch operand']
  %s0 = inlined_call_operand.vmem [shape: bf16[256,256], index: 0, kind: input, shape index: {}]
  %s1 = inlined_call_operand.vmem [shape: bf16[256,128], index: 1, kind: input, shape index: {}]
  %s2 = inlined_call_operand.vmem [shape: bf16[3,256,128], index: 2, kind: input, shape index: {}]
  %s3 = inlined_call_operand.vmem [shape: f32[3,1,128], index: 3, kind: input, shape index: {}]
  %s4 = inlined_call_operand.vmem [shape: f32[256,128], index: 4, kind: output, shape index: {}]
  %s5 = sld [smem:[#allocation0]]
  $region61: #{_lambda_.1} parent=0
    _
  %s7 = ssub.s32 1, %s5
  %s8 = scalar_select 0, %s7, %s5
  loop: start=0, step=1, limit=8
  $region2: #{_lambda_.1} parent=0 // loop_pre_header
    _
  $region3: #{_lambda_.1} parent=0 // loop_header
    %s10 = sphi 0, %s14
    %p11 = scmp.ge.s32.totalorder %s10, 8
    %s17 = sphi 0, %s29
    %s18 = sphi 0, %s25
    %s19 = sphi 0, %s17
    %s20 = sphi 0, %s18
    %s21 = sphi 0, %s19
    %s22 = sphi 0, %s20
    %s30 = sphi 0, %s30
    %s32 = sphi 0, %s30
    %s33 = sphi 0, %s32
    %s47 = sphi 0, %s33
    %s51 = sphi 0, %s51
    %s53 = sphi 0, %s51
    %s54 = sphi 0, %s53
    %s68 = sphi 0, %s54
    %s74 = sphi 0, %s76
    %s77 = sphi 0, %s74
    %s78 = sphi 0, %s77
    %s94 = sphi 0, %s78
    %s100 = sphi 0, %s102
    %s103 = sphi 0, %s100
    %s104 = sphi 0, %s103
    %s120 = sphi 0, %s104
    %s126 = sphi 0, %s128
    %s129 = sphi 0, %s126
    %s130 = sphi 0, %s129
    %s146 = sphi 0, %s130
  $region4: #{_lambda_.1} parent=0 // loop_header_branch
    %13 = sbr.rel (%p11) target = $region8
  $region5: #{_lambda_.1} parent=0 // loop_body
    %s15 = ssub.s32 %s10, 1
    %s16 = ssub.s32 %s10, 2
    %s23 = sadd.s32 1, %s18
    %p24 = scmp.ge.s32.totalorder %s23, 2
    %s25 = scalar_select %p24, 0, %s23
    %s26 = sadd.s32 1, %s17
    %s27 = scalar_select %p24, %s26, %s17
    %p28 = scmp.ge.s32.totalorder %s27, 3
    %s29 = scalar_select %p28, 0, %s27
    %s31 = sadd.s32 %s30, 1
    %p34 = scmp.eq.s32.totalorder %s10, 5
    %p35 = scmp.ne.s32.totalorder %s30, %s32
    %p36 = scmp.eq.s32.totalorder %s10, 0
    %p37 = por %p35, %p36
    %p38 = scmp.ne.s32.totalorder %s30, %s32
    %p39 = scmp.eq.s32.totalorder %s15, 5
    %p40 = por %p38, %p39
    %p41 = scmp.ne.s32.totalorder %s32, %s33
    %p42 = scmp.eq.s32.totalorder %s15, 0
    %p43 = por %p41, %p42
    %p44 = scmp.ne.s32.totalorder %s32, %s33
    %p45 = scmp.eq.s32.totalorder %s16, 5
    %p46 = por %p44, %p45
    %p48 = scmp.ne.s32.totalorder %s33, %s47
    %p49 = scmp.eq.s32.totalorder %s16, 0
    %p50 = por %p48, %p49
    %s52 = sadd.s32 %s51, 1
    %p55 = scmp.eq.s32.totalorder %s10, 5
    %p56 = scmp.ne.s32.totalorder %s51, %s53
    %p57 = scmp.eq.s32.totalorder %s10, 0
    %p58 = por %p56, %p57
    %p59 = scmp.ne.s32.totalorder %s51, %s53
    %p60 = scmp.eq.s32.totalorder %s15, 5
    %p61 = por %p59, %p60
    %p62 = scmp.ne.s32.totalorder %s53, %s54
    %p63 = scmp.eq.s32.totalorder %s15, 0
    %p64 = por %p62, %p63
    %p65 = scmp.ne.s32.totalorder %s53, %s54
    %p66 = scmp.eq.s32.totalorder %s16, 5
    %p67 = por %p65, %p66
    %p69 = scmp.ne.s32.totalorder %s54, %s68
    %p70 = scmp.eq.s32.totalorder %s16, 0
    %p71 = por %p69, %p70
    %s72 = ssub.s32 %s17, %s29
    %p73 = scmp.eq.s32.totalorder %s72, 0
    %s75 = sadd.s32 %s74, 1
    %s76 = scalar_select %p73, %s74, %s75
    %p79 = pneg %p73
    %p80 = scmp.eq.s32.totalorder %s10, 5
    %p81 = por %p79, %p80
    %p82 = scmp.ne.s32.totalorder %s74, %s77
    %p83 = scmp.eq.s32.totalorder %s10, 0
    %p84 = por %p82, %p83
    %p85 = scmp.ne.s32.totalorder %s74, %s77
    %p86 = scmp.eq.s32.totalorder %s15, 5
    %p87 = por %p85, %p86
    %p88 = scmp.ne.s32.totalorder %s77, %s78
    %p89 = scmp.eq.s32.totalorder %s15, 0
    %p90 = por %p88, %p89
    %p91 = scmp.ne.s32.totalorder %s77, %s78
    %p92 = scmp.eq.s32.totalorder %s16, 5
    %p93 = por %p91, %p92
    %p95 = scmp.ne.s32.totalorder %s78, %s94
    %p96 = scmp.eq.s32.totalorder %s16, 0
    %p97 = por %p95, %p96
    %s98 = ssub.s32 %s17, %s29
    %p99 = scmp.eq.s32.totalorder %s98, 0
    %s101 = sadd.s32 %s100, 1
    %s102 = scalar_select %p99, %s100, %s101
    %p105 = pneg %p99
    %p106 = scmp.eq.s32.totalorder %s10, 5
    %p107 = por %p105, %p106
    %p108 = scmp.ne.s32.totalorder %s100, %s103
    %p109 = scmp.eq.s32.totalorder %s10, 0
    %p110 = por %p108, %p109
    %p111 = scmp.ne.s32.totalorder %s100, %s103
    %p112 = scmp.eq.s32.totalorder %s15, 5
    %p113 = por %p111, %p112
    %p114 = scmp.ne.s32.totalorder %s103, %s104
    %p115 = scmp.eq.s32.totalorder %s15, 0
    %p116 = por %p114, %p115
    %p117 = scmp.ne.s32.totalorder %s103, %s104
    %p118 = scmp.eq.s32.totalorder %s16, 5
    %p119 = por %p117, %p118
    %p121 = scmp.ne.s32.totalorder %s104, %s120
    %p122 = scmp.eq.s32.totalorder %s16, 0
    %p123 = por %p121, %p122
    %s124 = ssub.s32 %s18, %s25
    %p125 = scmp.eq.s32.totalorder %s124, 0
    %s127 = sadd.s32 %s126, 1
    %s128 = scalar_select %p125, %s126, %s127
    %p131 = pneg %p125
    %p132 = scmp.eq.s32.totalorder %s10, 5
    %p133 = por %p131, %p132
    %p134 = scmp.ne.s32.totalorder %s126, %s129
    %p135 = scmp.eq.s32.totalorder %s10, 0
    %p136 = por %p134, %p135
    %p137 = scmp.ne.s32.totalorder %s126, %s129
    %p138 = scmp.eq.s32.totalorder %s15, 5
    %p139 = por %p137, %p138
    %p140 = scmp.ne.s32.totalorder %s129, %s130
    %p141 = scmp.eq.s32.totalorder %s15, 0
    %p142 = por %p140, %p141
    %p143 = scmp.ne.s32.totalorder %s129, %s130
    %p144 = scmp.eq.s32.totalorder %s16, 5
    %p145 = por %p143, %p144
    %p147 = scmp.ne.s32.totalorder %s130, %s146
    %p148 = scmp.eq.s32.totalorder %s16, 0
    %p149 = por %p147, %p148
    %p150 = scmp.le.s32.totalorder 1, %s10
    %p151 = scmp.lt.s32.totalorder %s10, 7
    %p152 = pnand %p150, %p151
    %p153 = pneg %p152
    // Predicated region
    $region9: #{_lambda_.1} parent=5 // pred_check
      _
    $region10: #{_lambda_.1} parent=5 // pred_check_branch
      %155 = sbr.rel (%p152) target = $region12
    $region11: #{_lambda_.1} parent=5 // pred_region
      %s156 = ssub.s32 %s10, 1
      // Predicated region
      $region13: #{_lambda_.1} parent=11 // pred_check
        %p157 = pneg %p43
      $region14: #{_lambda_.1} parent=11 // pred_check_branch
        %159 = sbr.rel (%p157) target = $region16
      $region15: #{_lambda_.1} parent=11 // pred_region
        _
      $region16: #{_lambda_.1} parent=11 // pred_fallthru
        _
      // Predicated region
      $region17: #{_lambda_.1} parent=11 // pred_check
        %p160 = pneg %p64
      $region18: #{_lambda_.1} parent=11 // pred_check_branch
        %162 = sbr.rel (%p160) target = $region20
      $region19: #{_lambda_.1} parent=11 // pred_region
        _
      $region20: #{_lambda_.1} parent=11 // pred_fallthru
        _
    $region12: #{_lambda_.1} parent=5 // pred_fallthru
      _
    %p163 = scmp.lt.s32.totalorder %s10, 6
    // Predicated region
    $region21: #{_lambda_.1} parent=5 // pred_check
      %p164 = pneg %p163
    $region22: #{_lambda_.1} parent=5 // pred_check_branch
      %166 = sbr.rel (%p164) target = $region24
    $region23: #{_lambda_.1} parent=5 // pred_region
      // Predicated region
      $region25: #{_lambda_.1} parent=23 // pred_check
        %p167 = pneg %p84
      $region26: #{_lambda_.1} parent=23 // pred_check_branch
        %169 = sbr.rel (%p167) target = $region28
      $region27: #{_lambda_.1} parent=23 // pred_region
        %p170 = scmp.lt.s32.totalorder %s17, 2
        %s171 = scalar_select %p170, %s17, 2
        %s172 = smul.addr %s171, 32
        %s173 = smul.addr %s172, 4
        %s174 = scalar_lea.vmem %s2, %s173
      $region28: #{_lambda_.1} parent=23 // pred_fallthru
        _
      // Predicated region
      $region29: #{_lambda_.1} parent=23 // pred_check
        %p175 = pneg %p110
      $region30: #{_lambda_.1} parent=23 // pred_check_branch
        %177 = sbr.rel (%p175) target = $region32
      $region31: #{_lambda_.1} parent=23 // pred_region
        %p178 = scmp.lt.s32.totalorder %s17, 2
        %s179 = scalar_select %p178, %s17, 2
        %s180 = scalar_lea.vmem %s3, %s179
      $region32: #{_lambda_.1} parent=23 // pred_fallthru
        _
    $region24: #{_lambda_.1} parent=5 // pred_fallthru
      _
    %p181 = scmp.le.s32.totalorder 1, %s10
    %p182 = scmp.lt.s32.totalorder %s10, 7
    %p183 = pnand %p181, %p182
    %p184 = pneg %p183
    // Predicated region
    $region33: #{_lambda_.1} parent=5 // pred_check
      _
    $region34: #{_lambda_.1} parent=5 // pred_check_branch
      %186 = sbr.rel (%p183) target = $region36
    $region35: #{_lambda_.1} parent=5 // pred_region
      %s187 = ssub.s32 %s10, 1
      %p188 = pneg %p43
      %p189 = pneg %p40
      %p190 = pneg %p64
      %p191 = pneg %p61
      %p192 = scmp.lt.s32.totalorder %s19, 2
      %s193 = scalar_select %p192, %s19, 2
      %s194 = smul.addr %s193, 32
      %s195 = smul.addr %s194, 4
      %s196 = scalar_lea.vmem %s2, %s195
      %p197 = pneg %p90
      %p198 = pneg %p87
      %p199 = scmp.lt.s32.totalorder %s19, 2
      %s200 = scalar_select %p199, %s19, 2
      %s201 = scalar_lea.vmem %s3, %s200
      %p202 = pneg %p116
      %p203 = pneg %p113
      %p204 = pneg %p142
      %p205 = pneg %p139
      %s206 = smul.u32 16, %s20
      %p207 = scmp.lt.s32.totalorder %s206, 31
      %s208 = scalar_select %p207, %s206, 31
      %s209 = smul.addr %s208, 8
      %s210 = scalar_lea.vmem %s4, %s209
      %p211 = scmp.lt.s32.totalorder %s19, 2
      %s212 = scalar_select %p211, %s19, 2
      %s213 = smul.addr %s212, 32
      %s214 = smul.addr %s213, 4
      %s215 = scalar_lea.vmem %s2, %s214
      %p216 = scmp.lt.s32.totalorder %s19, 2
      %s217 = scalar_select %p216, %s19, 2
      %s218 = scalar_lea.vmem %s3, %s217
      %s219 = smul.u32 16, %s20
      %p220 = scmp.lt.s32.totalorder %s219, 31
      %s221 = scalar_select %p220, %s219, 31
      %s222 = smul.addr %s221, 8
      %s223 = scalar_lea.vmem %s4, %s222
      %s224 = smul.u32 16, %s20
      %s226 = smul.u32 %s20, 128
      %p227 = scmp.eq.s32.totalorder %s19, 0
      %p228 = scmp.eq.s32.totalorder %s20, 0
      %p229 = pnand %p227, %p228
      %p230 = pneg %p229
      // Predicated region
      $region37: #{_lambda_.1} parent=35 // pred_check
        _
      $region38: #{_lambda_.1} parent=35 // pred_check_branch
        %232 = sbr.rel (%p229) target = $region40
      $region39: #{_lambda_.1} parent=35 // pred_region
        %v233 = vld [vmem:[%s1] sm:$0xf]
        %v234 = vld [vmem:[%s1 + $0x4] sm:$0xf]
        %v235 = vld [vmem:[%s1 + $0x8] sm:$0xf]
        %v236 = vld [vmem:[%s1 + $0xc] sm:$0xf]
        %v237 = vld [vmem:[%s1 + $0x10] sm:$0xf]
        %v238 = vld [vmem:[%s1 + $0x14] sm:$0xf]
        %v239 = vld [vmem:[%s1 + $0x18] sm:$0xf]
        %v240 = vld [vmem:[%s1 + $0x1c] sm:$0xf]
        %v241 = vld [vmem:[%s1 + $0x20] sm:$0xf]
        %v242 = vld [vmem:[%s1 + $0x24] sm:$0xf]
        %v243 = vld [vmem:[%s1 + $0x28] sm:$0xf]
        %v244 = vld [vmem:[%s1 + $0x2c] sm:$0xf]
        %v245 = vld [vmem:[%s1 + $0x30] sm:$0xf]
        %v246 = vld [vmem:[%s1 + $0x34] sm:$0xf]
        %v247 = vld [vmem:[%s1 + $0x38] sm:$0xf]
        %v248 = vld [vmem:[%s1 + $0x3c] sm:$0xf]
        %v249 = vld [vmem:[%s1 + $0x40] sm:$0xf]
        %v250 = vld [vmem:[%s1 + $0x44] sm:$0xf]
        %v251 = vld [vmem:[%s1 + $0x48] sm:$0xf]
        %v252 = vld [vmem:[%s1 + $0x4c] sm:$0xf]
        %v253 = vld [vmem:[%s1 + $0x50] sm:$0xf]
        %v254 = vld [vmem:[%s1 + $0x54] sm:$0xf]
        %v255 = vld [vmem:[%s1 + $0x58] sm:$0xf]
        %v256 = vld [vmem:[%s1 + $0x5c] sm:$0xf]
        %v257 = vld [vmem:[%s1 + $0x60] sm:$0xf]
        %v258 = vld [vmem:[%s1 + $0x64] sm:$0xf]
        %v259 = vld [vmem:[%s1 + $0x68] sm:$0xf]
        %v260 = vld [vmem:[%s1 + $0x6c] sm:$0xf]
        %v261 = vld [vmem:[%s1 + $0x70] sm:$0xf]
        %v262 = vld [vmem:[%s1 + $0x74] sm:$0xf]
        %v263 = vld [vmem:[%s1 + $0x78] sm:$0xf]
        %v264 = vld [vmem:[%s1 + $0x7c] sm:$0xf]
        %v297 = vunpack.c.l.b16 %v233
        %v298 = vunpack.c.l.b16 %v234
        %v299 = vunpack.c.l.b16 %v235
        %v300 = vunpack.c.l.b16 %v236
        %v301 = vunpack.c.l.b16 %v237
        %v302 = vunpack.c.l.b16 %v238
        %v303 = vunpack.c.l.b16 %v239
        %v304 = vunpack.c.l.b16 %v240
        %v305 = vunpack.c.l.b16 %v241
        %v306 = vunpack.c.l.b16 %v242
        %v307 = vunpack.c.l.b16 %v243
        %v308 = vunpack.c.l.b16 %v244
        %v309 = vunpack.c.l.b16 %v245
        %v310 = vunpack.c.l.b16 %v246
        %v311 = vunpack.c.l.b16 %v247
        %v312 = vunpack.c.l.b16 %v248
        %v313 = vunpack.c.l.b16 %v249
        %v314 = vunpack.c.l.b16 %v250
        %v315 = vunpack.c.l.b16 %v251
        %v316 = vunpack.c.l.b16 %v252
        %v317 = vunpack.c.l.b16 %v253
        %v318 = vunpack.c.l.b16 %v254
        %v319 = vunpack.c.l.b16 %v255
        %v320 = vunpack.c.l.b16 %v256
        %v321 = vunpack.c.l.b16 %v257
        %v322 = vunpack.c.l.b16 %v258
        %v323 = vunpack.c.l.b16 %v259
        %v324 = vunpack.c.l.b16 %v260
        %v325 = vunpack.c.l.b16 %v261
        %v326 = vunpack.c.l.b16 %v262
        %v327 = vunpack.c.l.b16 %v263
        %v328 = vunpack.c.l.b16 %v264
        %v329 = vpack.c.b16 %v298, %v297
        %v330 = vpack.c.b16 %v300, %v299
        %v331 = vpack.c.b16 %v302, %v301
        %v332 = vpack.c.b16 %v304, %v303
        %v333 = vpack.c.b16 %v306, %v305
        %v334 = vpack.c.b16 %v308, %v307
        %v335 = vpack.c.b16 %v310, %v309
        %v336 = vpack.c.b16 %v312, %v311
        %v337 = vpack.c.b16 %v314, %v313
        %v338 = vpack.c.b16 %v316, %v315
        %v339 = vpack.c.b16 %v318, %v317
        %v340 = vpack.c.b16 %v320, %v319
        %v341 = vpack.c.b16 %v322, %v321
        %v342 = vpack.c.b16 %v324, %v323
        %v343 = vpack.c.b16 %v326, %v325
        %v344 = vpack.c.b16 %v328, %v327
        %361 = vst [vmem:[#allocation2] sm:$0xff] %v329
        %362 = vst [vmem:[#allocation2 + $0x8] sm:$0xff] %v330
        %363 = vst [vmem:[#allocation2 + $0x10] sm:$0xff] %v331
        %364 = vst [vmem:[#allocation2 + $0x18] sm:$0xff] %v332
        %365 = vst [vmem:[#allocation2 + $0x20] sm:$0xff] %v333
        %366 = vst [vmem:[#allocation2 + $0x28] sm:$0xff] %v334
        %367 = vst [vmem:[#allocation2 + $0x30] sm:$0xff] %v335
        %368 = vst [vmem:[#allocation2 + $0x38] sm:$0xff] %v336
        %369 = vst [vmem:[#allocation2 + $0x40] sm:$0xff] %v337
        %370 = vst [vmem:[#allocation2 + $0x48] sm:$0xff] %v338
        %371 = vst [vmem:[#allocation2 + $0x50] sm:$0xff] %v339
        %372 = vst [vmem:[#allocation2 + $0x58] sm:$0xff] %v340
        %373 = vst [vmem:[#allocation2 + $0x60] sm:$0xff] %v341
        %374 = vst [vmem:[#allocation2 + $0x68] sm:$0xff] %v342
        %375 = vst [vmem:[#allocation2 + $0x70] sm:$0xff] %v343
        %376 = vst [vmem:[#allocation2 + $0x78] sm:$0xff] %v344
      $region40: #{_lambda_.1} parent=35 // pred_fallthru
        _
      %s377 = sshra.s32 %s226, 3
      %s378 = sand.u32 %s226, 7
      %s379 = smul.u32 %s377, 2
      %s380 = smul.addr %s379, 4
      %s381 = scalar_lea.vmem %s0, %s380
      %v382 = vld [vmem:[%s381] sm:$0xff]
      %v383 = vld [vmem:[%s381 + $0x8] sm:$0xff]
      %v384 = vld [vmem:[%s381 + $0x10] sm:$0xff]
      %v385 = vld [vmem:[%s381 + $0x18] sm:$0xff]
      %v386 = vld [vmem:[%s381 + $0x20] sm:$0xff]
      %v387 = vld [vmem:[%s381 + $0x28] sm:$0xff]
      %v388 = vld [vmem:[%s381 + $0x30] sm:$0xff]
      %v389 = vld [vmem:[%s381 + $0x38] sm:$0xff]
      %v390 = vld [vmem:[%s381 + $0x40] sm:$0xff]
      %v391 = vld [vmem:[%s381 + $0x48] sm:$0xff]
      %v392 = vld [vmem:[%s381 + $0x50] sm:$0xff]
      %v393 = vld [vmem:[%s381 + $0x58] sm:$0xff]
      %v394 = vld [vmem:[%s381 + $0x60] sm:$0xff]
      %v395 = vld [vmem:[%s381 + $0x68] sm:$0xff]
      %v396 = vld [vmem:[%s381 + $0x70] sm:$0xff]
      %v397 = vld [vmem:[%s381 + $0x78] sm:$0xff]
      %v398 = vld [vmem:[%s215] sm:$0xf]
      %v399 = vld [vmem:[%s215 + $0x4] sm:$0xf]
      %v400 = vld [vmem:[%s215 + $0x8] sm:$0xf]
      %v401 = vld [vmem:[%s215 + $0xc] sm:$0xf]
      %v402 = vld [vmem:[%s215 + $0x10] sm:$0xf]
      %v403 = vld [vmem:[%s215 + $0x14] sm:$0xf]
      %v404 = vld [vmem:[%s215 + $0x18] sm:$0xf]
      %v405 = vld [vmem:[%s215 + $0x1c] sm:$0xf]
      %v406 = vld [vmem:[%s215 + $0x20] sm:$0xf]
      %v407 = vld [vmem:[%s215 + $0x24] sm:$0xf]
      %v408 = vld [vmem:[%s215 + $0x28] sm:$0xf]
      %v409 = vld [vmem:[%s215 + $0x2c] sm:$0xf]
      %v410 = vld [vmem:[%s215 + $0x30] sm:$0xf]
      %v411 = vld [vmem:[%s215 + $0x34] sm:$0xf]
      %v412 = vld [vmem:[%s215 + $0x38] sm:$0xf]
      %v413 = vld [vmem:[%s215 + $0x3c] sm:$0xf]
      %v414 = vld [vmem:[%s215 + $0x40] sm:$0xf]
      %v415 = vld [vmem:[%s215 + $0x44] sm:$0xf]
      %v416 = vld [vmem:[%s215 + $0x48] sm:$0xf]
      %v417 = vld [vmem:[%s215 + $0x4c] sm:$0xf]
      %v418 = vld [vmem:[%s215 + $0x50] sm:$0xf]
      %v419 = vld [vmem:[%s215 + $0x54] sm:$0xf]
      %v420 = vld [vmem:[%s215 + $0x58] sm:$0xf]
      %v421 = vld [vmem:[%s215 + $0x5c] sm:$0xf]
      %v422 = vld [vmem:[%s215 + $0x60] sm:$0xf]
      %v423 = vld [vmem:[%s215 + $0x64] sm:$0xf]
      %v424 = vld [vmem:[%s215 + $0x68] sm:$0xf]
      %v425 = vld [vmem:[%s215 + $0x6c] sm:$0xf]
      %v426 = vld [vmem:[%s215 + $0x70] sm:$0xf]
      %v427 = vld [vmem:[%s215 + $0x74] sm:$0xf]
      %v428 = vld [vmem:[%s215 + $0x78] sm:$0xf]
      %v429 = vld [vmem:[%s215 + $0x7c] sm:$0xf]
      %v430 = vld [vmem:[%s218] sm:$0x1]
      %p431 = scmp.lt.s32.totalorder %s19, 0
      %s432 = ssub.s32 0, %s19
      %s433 = scalar_select %p431, %s432, %s19
      %s434 = sand.u32 %s433, 1
      %s435 = ssub.s32 0, %s434
      %s436 = scalar_select %p431, %s435, %s434
      %p437 = scmp.ne.s32.totalorder %s436, 0
      %p438 = scmp.lt.s32.totalorder %s436, 0
      %p439 = pnand %p438, %p437
      %p440 = pneg %p439
      %s441 = sadd.s32 %s436, 2
      %s442 = scalar_select %p440, %s441, %s436
      %p443 = scmp.eq.s32.totalorder %s442, 0
      // Predicated region
      $region41: #{_lambda_.1} parent=35 // pred_check
        %p444 = pneg %p443
      $region42: #{_lambda_.1} parent=35 // pred_check_branch
        %446 = sbr.rel (%p444) target = $region44
      $region43: #{_lambda_.1} parent=35 // pred_region
        %v447 = vld [vmem:[#allocation2] sm:$0xff]
        %v448 = vld [vmem:[#allocation2 + $0x8] sm:$0xff]
        %v449 = vld [vmem:[#allocation2 + $0x10] sm:$0xff]
        %v450 = vld [vmem:[#allocation2 + $0x18] sm:$0xff]
        %v451 = vld [vmem:[#allocation2 + $0x20] sm:$0xff]
        %v452 = vld [vmem:[#allocation2 + $0x28] sm:$0xff]
        %v453 = vld [vmem:[#allocation2 + $0x30] sm:$0xff]
        %v454 = vld [vmem:[#allocation2 + $0x38] sm:$0xff]
        %v455 = vld [vmem:[#allocation2 + $0x40] sm:$0xff]
        %v456 = vld [vmem:[#allocation2 + $0x48] sm:$0xff]
        %v457 = vld [vmem:[#allocation2 + $0x50] sm:$0xff]
        %v458 = vld [vmem:[#allocation2 + $0x58] sm:$0xff]
        %v459 = vld [vmem:[#allocation2 + $0x60] sm:$0xff]
        %v460 = vld [vmem:[#allocation2 + $0x68] sm:$0xff]
        %v461 = vld [vmem:[#allocation2 + $0x70] sm:$0xff]
        %v462 = vld [vmem:[#allocation2 + $0x78] sm:$0xff]
        %s463 = sshra.s32 %s226, 4
        %s464 = sand.u32 %s226, 15
        %s465 = smul.addr %s463, 8
        %s466 = scalar_lea.vmem [#allocation2], %s465
        %v467 = vld [vmem:[%s466] sm:$0xff]
        %v468 = vld [vmem:[%s466 + $0x8] sm:$0xff]
        %v469 = vld [vmem:[%s466 + $0x10] sm:$0xff]
        %v470 = vld [vmem:[%s466 + $0x18] sm:$0xff]
        %v471 = vld [vmem:[%s466 + $0x20] sm:$0xff]
        %v472 = vld [vmem:[%s466 + $0x28] sm:$0xff]
        %v473 = vld [vmem:[%s466 + $0x30] sm:$0xff]
        %v474 = vld [vmem:[%s466 + $0x38] sm:$0xff]
        %v491 = vunpack.c.l.b16 %v382
        %v492 = vunpack.c.h.b16 %v382
        %v493 = vunpack.c.l.b16 %v383
        %v494 = vunpack.c.h.b16 %v383
        %v495 = vunpack.c.l.b16 %v384
        %v496 = vunpack.c.h.b16 %v384
        %v497 = vunpack.c.l.b16 %v385
        %v498 = vunpack.c.h.b16 %v385
        %v499 = vunpack.c.l.b16 %v386
        %v500 = vunpack.c.h.b16 %v386
        %v501 = vunpack.c.l.b16 %v387
        %v502 = vunpack.c.h.b16 %v387
        %v503 = vunpack.c.l.b16 %v388
        %v504 = vunpack.c.h.b16 %v388
        %v505 = vunpack.c.l.b16 %v389
        %v506 = vunpack.c.h.b16 %v389
        %v507 = vunpack.c.l.b16 %v390
        %v508 = vunpack.c.h.b16 %v390
        %v509 = vunpack.c.l.b16 %v391
        %v510 = vunpack.c.h.b16 %v391
        %v511 = vunpack.c.l.b16 %v392
        %v512 = vunpack.c.h.b16 %v392
        %v513 = vunpack.c.l.b16 %v393
        %v514 = vunpack.c.h.b16 %v393
        %v515 = vunpack.c.l.b16 %v394
        %v516 = vunpack.c.h.b16 %v394
        %v517 = vunpack.c.l.b16 %v395
        %v518 = vunpack.c.h.b16 %v395
        %v519 = vunpack.c.l.b16 %v396
        %v520 = vunpack.c.h.b16 %v396
        %v521 = vunpack.c.l.b16 %v397
        %v522 = vunpack.c.h.b16 %v397
        %v523 = vpack.c.b16 %v493, %v491
        %v524 = vpack.c.b16 %v494, %v492
        %v525 = vpack.c.b16 %v497, %v495
        %v526 = vpack.c.b16 %v498, %v496
        %v527 = vpack.c.b16 %v501, %v499
        %v528 = vpack.c.b16 %v502, %v500
        %v529 = vpack.c.b16 %v505, %v503
        %v530 = vpack.c.b16 %v506, %v504
        %v531 = vpack.c.b16 %v509, %v507
        %v532 = vpack.c.b16 %v510, %v508
        %v533 = vpack.c.b16 %v513, %v511
        %v534 = vpack.c.b16 %v514, %v512
        %v535 = vpack.c.b16 %v517, %v515
        %v536 = vpack.c.b16 %v518, %v516
        %v537 = vpack.c.b16 %v521, %v519
        %v538 = vpack.c.b16 %v522, %v520
        %555 = vmatprep.subr.bf16.mxu0 0
        %556 = vmatpush1.bf16.msra.mxu0 %v447
        %557 = vmatprep.subr.bf16.mxu0 0
        %558 = vmatpush1.bf16.msra.mxu0 %v448
        %559 = vmatprep.subr.bf16.mxu0 0
        %560 = vmatpush1.bf16.msra.mxu0 %v449
        %561 = vmatprep.subr.bf16.mxu0 0
        %562 = vmatpush1.bf16.msra.mxu0 %v450
        %563 = vmatprep.subr.bf16.mxu0 0
        %564 = vmatpush1.bf16.msra.mxu0 %v451
        %565 = vmatprep.subr.bf16.mxu0 0
        %566 = vmatpush1.bf16.msra.mxu0 %v452
        %567 = vmatprep.subr.bf16.mxu0 0
        %568 = vmatpush1.bf16.msra.mxu0 %v453
        %569 = vmatprep.subr.bf16.mxu0 0
        %570 = vmatpush1.bf16.msra.mxu0 %v454
        %571 = vmatprep.subr.bf16.mxu0 0
        %572 = vmatpush1.bf16.msra.mxu0 %v455
        %573 = vmatprep.subr.bf16.mxu0 0
        %574 = vmatpush1.bf16.msra.mxu0 %v456
        %575 = vmatprep.subr.bf16.mxu0 0
        %576 = vmatpush1.bf16.msra.mxu0 %v457
        %577 = vmatprep.subr.bf16.mxu0 0
        %578 = vmatpush1.bf16.msra.mxu0 %v458
        %579 = vmatprep.subr.bf16.mxu0 0
        %580 = vmatpush1.bf16.msra.mxu0 %v459
        %581 = vmatprep.subr.bf16.mxu0 0
        %582 = vmatpush1.bf16.msra.mxu0 %v460
        %583 = vmatprep.subr.bf16.mxu0 0
        %584 = vmatpush1.bf16.msra.mxu0 %v461
        %585 = vmatprep.subr.bf16.mxu0 0
        %586 = vmatpush1.bf16.msra.mxu0 %v462
        %587 = vmatprep.mubr.bf16.mxu0 %v524
        %588 = vmatmul.mubr.bf16.gmra.mrb[0].mxu0 %v523
        %v589 = vpop.f32.mrb[0].mxu0
        %v590 = vadd.f32 0.0, %v589
        %v591 = vpop.f32.mrb[0].mxu0
        %v592 = vpop.f32.mrb[0].mxu0
        %v593 = vadd.f32 0.0, %v592
        %v594 = vpop.f32.mrb[0].mxu0
        %595 = vmatprep.mubr.bf16.mxu0 %v526
        %596 = vmatmul.mubr.bf16.gmra.mrb[0].mxu0 %v525
        %v597 = vpop.f32.mrb[0].mxu0
        %v598 = vadd.f32 0.0, %v597
        %v599 = vpop.f32.mrb[0].mxu0
        %v600 = vpop.f32.mrb[0].mxu0
        %v601 = vadd.f32 0.0, %v600
        %v602 = vpop.f32.mrb[0].mxu0
        %603 = vmatprep.mubr.bf16.mxu0 %v528
        %604 = vmatmul.mubr.bf16.gmra.mrb[0].mxu0 %v527
        %v605 = vpop.f32.mrb[0].mxu0
        %v606 = vadd.f32 0.0, %v605
        %v607 = vpop.f32.mrb[0].mxu0
        %v608 = vpop.f32.mrb[0].mxu0
        %v609 = vadd.f32 0.0, %v608
        %v610 = vpop.f32.mrb[0].mxu0
        %611 = vmatprep.mubr.bf16.mxu0 %v530
        %612 = vmatmul.mubr.bf16.gmra.mrb[0].mxu0 %v529
        %v613 = vpop.f32.mrb[0].mxu0
        %v614 = vadd.f32 0.0, %v613
        %v615 = vpop.f32.mrb[0].mxu0
        %v616 = vpop.f32.mrb[0].mxu0
        %v617 = vadd.f32 0.0, %v616
        %v618 = vpop.f32.mrb[0].mxu0
        %619 = vmatprep.mubr.bf16.mxu0 %v532
        %620 = vmatmul.mubr.bf16.gmra.mrb[0].mxu0 %v531
        %v621 = vpop.f32.mrb[0].mxu0
        %v622 = vadd.f32 0.0, %v621
        %v623 = vpop.f32.mrb[0].mxu0
        %v624 = vpop.f32.mrb[0].mxu0
        %v625 = vadd.f32 0.0, %v624
        %v626 = vpop.f32.mrb[0].mxu0
        %627 = vmatprep.mubr.bf16.mxu0 %v534
        %628 = vmatmul.mubr.bf16.gmra.mrb[0].mxu0 %v533
        %v629 = vpop.f32.mrb[0].mxu0
        %v630 = vadd.f32 0.0, %v629
        %v631 = vpop.f32.mrb[0].mxu0
        %v632 = vpop.f32.mrb[0].mxu0
        %v633 = vadd.f32 0.0, %v632
        %v634 = vpop.f32.mrb[0].mxu0
        %635 = vmatprep.mubr.bf16.mxu0 %v536
        %636 = vmatmul.mubr.bf16.gmra.mrb[0].mxu0 %v535
        %v637 = vpop.f32.mrb[0].mxu0
        %v638 = vadd.f32 0.0, %v637
        %v639 = vpop.f32.mrb[0].mxu0
        %v640 = vpop.f32.mrb[0].mxu0
        %v641 = vadd.f32 0.0, %v640
        %v642 = vpop.f32.mrb[0].mxu0
        %643 = vmatprep.mubr.bf16.mxu0 %v538
        %644 = vmatmul.mubr.bf16.gmra.mrb[0].mxu0 %v537
        %v645 = vpop.f32.mrb[0].mxu0
        %v646 = vadd.f32 0.0, %v645
        %v647 = vpop.f32.mrb[0].mxu0
        %v648 = vpop.f32.mrb[0].mxu0
        %v649 = vadd.f32 0.0, %v648
        %v650 = vpop.f32.mrb[0].mxu0
        %651 = vdwg.mxu0
        %v652 = vpack.c.bf16 %v593, %v590
        %v653 = vpack.c.bf16 %v601, %v598
        %v654 = vpack.c.bf16 %v609, %v606
        %v655 = vpack.c.bf16 %v617, %v614
        %v656 = vpack.c.bf16 %v625, %v622
        %v657 = vpack.c.bf16 %v633, %v630
        %v658 = vpack.c.bf16 %v641, %v638
        %v659 = vpack.c.bf16 %v649, %v646
        %v661 = vlaneseq
        %v662 = vshrl.u32 %v661, 7
        %v663 = vsub.s32 0, %v662
        %v664 = vrot.slane %v430, %v663
        %v698 = vunpack.c.l.b16 %v398
        %v699 = vunpack.c.l.b16 %v399
        %v700 = vunpack.c.l.b16 %v400
        %v701 = vunpack.c.l.b16 %v401
        %v702 = vunpack.c.l.b16 %v402
        %v703 = vunpack.c.l.b16 %v403
        %v704 = vunpack.c.l.b16 %v404
        %v705 = vunpack.c.l.b16 %v405
        %v706 = vunpack.c.l.b16 %v406
        %v707 = vunpack.c.l.b16 %v407
        %v708 = vunpack.c.l.b16 %v408
        %v709 = vunpack.c.l.b16 %v409
        %v710 = vunpack.c.l.b16 %v410
        %v711 = vunpack.c.l.b16 %v411
        %v712 = vunpack.c.l.b16 %v412
        %v713 = vunpack.c.l.b16 %v413
        %v714 = vunpack.c.l.b16 %v414
        %v715 = vunpack.c.l.b16 %v415
        %v716 = vunpack.c.l.b16 %v416
        %v717 = vunpack.c.l.b16 %v417
        %v718 = vunpack.c.l.b16 %v418
        %v719 = vunpack.c.l.b16 %v419
        %v720 = vunpack.c.l.b16 %v420
        %v721 = vunpack.c.l.b16 %v421
        %v722 = vunpack.c.l.b16 %v422
        %v723 = vunpack.c.l.b16 %v423
        %v724 = vunpack.c.l.b16 %v424
        %v725 = vunpack.c.l.b16 %v425
        %v726 = vunpack.c.l.b16 %v426
        %v727 = vunpack.c.l.b16 %v427
        %v728 = vunpack.c.l.b16 %v428
        %v729 = vunpack.c.l.b16 %v429
        %v730 = vpack.c.b16 %v699, %v698
        %v731 = vpack.c.b16 %v701, %v700
        %v732 = vpack.c.b16 %v703, %v702
        %v733 = vpack.c.b16 %v705, %v704
        %v734 = vpack.c.b16 %v707, %v706
        %v735 = vpack.c.b16 %v709, %v708
        %v736 = vpack.c.b16 %v711, %v710
        %v737 = vpack.c.b16 %v713, %v712
        %v738 = vpack.c.b16 %v715, %v714
        %v739 = vpack.c.b16 %v717, %v716
        %v740 = vpack.c.b16 %v719, %v718
        %v741 = vpack.c.b16 %v721, %v720
        %v742 = vpack.c.b16 %v723, %v722
        %v743 = vpack.c.b16 %v725, %v724
        %v744 = vpack.c.b16 %v727, %v726
        %v745 = vpack.c.b16 %v729, %v728
        %762 = vmatprep.subr.bf16.mxu0 0
        %763 = vmatpush1.bf16.msra.mxu0 %v730
        %764 = vmatprep.subr.bf16.mxu0 0
        %765 = vmatpush1.bf16.msra.mxu0 %v731
        %766 = vmatprep.subr.bf16.mxu0 0
        %767 = vmatpush1.bf16.msra.mxu0 %v732
        %768 = vmatprep.subr.bf16.mxu0 0
        %769 = vmatpush1.bf16.msra.mxu0 %v733
        %770 = vmatprep.subr.bf16.mxu0 0
        %771 = vmatpush1.bf16.msra.mxu0 %v734
        %772 = vmatprep.subr.bf16.mxu0 0
        %773 = vmatpush1.bf16.msra.mxu0 %v735
        %774 = vmatprep.subr.bf16.mxu0 0
        %775 = vmatpush1.bf16.msra.mxu0 %v736
        %776 = vmatprep.subr.bf16.mxu0 0
        %777 = vmatpush1.bf16.msra.mxu0 %v737
        %778 = vmatprep.subr.bf16.mxu0 0
        %779 = vmatpush1.bf16.msra.mxu0 %v738
        %780 = vmatprep.subr.bf16.mxu0 0
        %781 = vmatpush1.bf16.msra.mxu0 %v739
        %782 = vmatprep.subr.bf16.mxu0 0
        %783 = vmatpush1.bf16.msra.mxu0 %v740
        %784 = vmatprep.subr.bf16.mxu0 0
        %785 = vmatpush1.bf16.msra.mxu0 %v741
        %786 = vmatprep.subr.bf16.mxu0 0
        %787 = vmatpush1.bf16.msra.mxu0 %v742
        %788 = vmatprep.subr.bf16.mxu0 0
        %789 = vmatpush1.bf16.msra.mxu0 %v743
        %790 = vmatprep.subr.bf16.mxu0 0
        %791 = vmatpush1.bf16.msra.mxu0 %v744
        %792 = vmatprep.subr.bf16.mxu0 0
        %793 = vmatpush1.bf16.msra.mxu0 %v745
        %794 = vmatprep.mubr.bf16.mxu0 %v652
        %795 = vmatmul.mubr.bf16.gmra.mrb[0].mxu0 %v467
        %v796 = vpop.f32.mrb[0].mxu0
        %v797 = vadd.f32 %v664, %v796
        %v798 = vpop.f32.mrb[0].mxu0
        %v799 = vpop.f32.mrb[0].mxu0
        %v800 = vadd.f32 %v664, %v799
        %v801 = vpop.f32.mrb[0].mxu0
        %802 = vmatprep.mubr.bf16.mxu0 %v653
        %803 = vmatmul.mubr.bf16.gmra.mrb[0].mxu0 %v468
        %v804 = vpop.f32.mrb[0].mxu0
        %v805 = vadd.f32 %v664, %v804
        %v806 = vpop.f32.mrb[0].mxu0
        %v807 = vpop.f32.mrb[0].mxu0
        %v808 = vadd.f32 %v664, %v807
        %v809 = vpop.f32.mrb[0].mxu0
        %810 = vmatprep.mubr.bf16.mxu0 %v654
        %811 = vmatmul.mubr.bf16.gmra.mrb[0].mxu0 %v469
        %v812 = vpop.f32.mrb[0].mxu0
        %v813 = vadd.f32 %v664, %v812
        %v814 = vpop.f32.mrb[0].mxu0
        %v815 = vpop.f32.mrb[0].mxu0
        %v816 = vadd.f32 %v664, %v815
        %v817 = vpop.f32.mrb[0].mxu0
        %818 = vmatprep.mubr.bf16.mxu0 %v655
        %819 = vmatmul.mubr.bf16.gmra.mrb[0].mxu0 %v470
        %v820 = vpop.f32.mrb[0].mxu0
        %v821 = vadd.f32 %v664, %v820
        %v822 = vpop.f32.mrb[0].mxu0
        %v823 = vpop.f32.mrb[0].mxu0
        %v824 = vadd.f32 %v664, %v823
        %v825 = vpop.f32.mrb[0].mxu0
        %826 = vmatprep.mubr.bf16.mxu0 %v656
        %827 = vmatmul.mubr.bf16.gmra.mrb[0].mxu0 %v471
        %v828 = vpop.f32.mrb[0].mxu0
        %v829 = vadd.f32 %v664, %v828
        %v830 = vpop.f32.mrb[0].mxu0
        %v831 = vpop.f32.mrb[0].mxu0
        %v832 = vadd.f32 %v664, %v831
        %v833 = vpop.f32.mrb[0].mxu0
        %834 = vmatprep.mubr.bf16.mxu0 %v657
        %835 = vmatmul.mubr.bf16.gmra.mrb[0].mxu0 %v472
        %v836 = vpop.f32.mrb[0].mxu0
        %v837 = vadd.f32 %v664, %v836
        %v838 = vpop.f32.mrb[0].mxu0
        %v839 = vpop.f32.mrb[0].mxu0
        %v840 = vadd.f32 %v664, %v839
        %v841 = vpop.f32.mrb[0].mxu0
        %842 = vmatprep.mubr.bf16.mxu0 %v658
        %843 = vmatmul.mubr.bf16.gmra.mrb[0].mxu0 %v473
        %v844 = vpop.f32.mrb[0].mxu0
        %v845 = vadd.f32 %v664, %v844
        %v846 = vpop.f32.mrb[0].mxu0
        %v847 = vpop.f32.mrb[0].mxu0
        %v848 = vadd.f32 %v664, %v847
        %v849 = vpop.f32.mrb[0].mxu0
        %850 = vmatprep.mubr.bf16.mxu0 %v659
        %851 = vmatmul.mubr.bf16.gmra.mrb[0].mxu0 %v474
        %v852 = vpop.f32.mrb[0].mxu0
        %v853 = vadd.f32 %v664, %v852
        %v854 = vpop.f32.mrb[0].mxu0
        %v855 = vpop.f32.mrb[0].mxu0
        %v856 = vadd.f32 %v664, %v855
        %v857 = vpop.f32.mrb[0].mxu0
        %858 = vdwg.mxu0
        %p859 = scmp.lt.s32.totalorder %s19, 2
        %v860 = vmax.f32 %v797, 0.0
        %v861 = vmax.f32 %v800, 0.0
        %v862 = vmax.f32 %v805, 0.0
        %v863 = vmax.f32 %v808, 0.0
        %v864 = vmax.f32 %v813, 0.0
        %v865 = vmax.f32 %v816, 0.0
        %v866 = vmax.f32 %v821, 0.0
        %v867 = vmax.f32 %v824, 0.0
        %v868 = vmax.f32 %v829, 0.0
        %v869 = vmax.f32 %v832, 0.0
        %v870 = vmax.f32 %v837, 0.0
        %v871 = vmax.f32 %v840, 0.0
        %v872 = vmax.f32 %v845, 0.0
        %v873 = vmax.f32 %v848, 0.0
        %v874 = vmax.f32 %v853, 0.0
        %v875 = vmax.f32 %v856, 0.0
        %s876 = scalar_select %p859, 1, 0
        %v877 = vstv %s876
        %vm878 = vcmp.eq.s32.totalorder %v877, 1
        %v879 = vsel %vm878, %v860, %v797
        %v880 = vsel %vm878, %v861, %v800
        %v881 = vsel %vm878, %v862, %v805
        %v882 = vsel %vm878, %v863, %v808
        %v883 = vsel %vm878, %v864, %v813
        %v884 = vsel %vm878, %v865, %v816
        %v885 = vsel %vm878, %v866, %v821
        %v886 = vsel %vm878, %v867, %v824
        %v887 = vsel %vm878, %v868, %v829
        %v888 = vsel %vm878, %v869, %v832
        %v889 = vsel %vm878, %v870, %v837
        %v890 = vsel %vm878, %v871, %v840
        %v891 = vsel %vm878, %v872, %v845
        %v892 = vsel %vm878, %v873, %v848
        %v893 = vsel %vm878, %v874, %v853
        %v894 = vsel %vm878, %v875, %v856
        %v895 = vpack.c.bf16 %v880, %v879
        %v896 = vpack.c.bf16 %v882, %v881
        %v897 = vpack.c.bf16 %v884, %v883
        %v898 = vpack.c.bf16 %v886, %v885
        %v899 = vpack.c.bf16 %v888, %v887
        %v900 = vpack.c.bf16 %v890, %v889
        %v901 = vpack.c.bf16 %v892, %v891
        %v902 = vpack.c.bf16 %v894, %v893
        %s903 = smul.addr %s463, 8
        %s904 = scalar_lea.vmem [#allocation3], %s903
        %905 = vst [vmem:[%s904] sm:$0xff] %v895
        %906 = vst [vmem:[%s904 + $0x8] sm:$0xff] %v896
        %907 = vst [vmem:[%s904 + $0x10] sm:$0xff] %v897
        %908 = vst [vmem:[%s904 + $0x18] sm:$0xff] %v898
        %909 = vst [vmem:[%s904 + $0x20] sm:$0xff] %v899
        %910 = vst [vmem:[%s904 + $0x28] sm:$0xff] %v900
        %911 = vst [vmem:[%s904 + $0x30] sm:$0xff] %v901
        %912 = vst [vmem:[%s904 + $0x38] sm:$0xff] %v902
        %913 = vst [vmem:[%s223] sm:$0xff] %v879
        %914 = vst [vmem:[%s223 + $0x8] sm:$0xff] %v880
        %915 = vst [vmem:[%s223 + $0x10] sm:$0xff] %v881
        %916 = vst [vmem:[%s223 + $0x18] sm:$0xff] %v882
        %917 = vst [vmem:[%s223 + $0x20] sm:$0xff] %v883
        %918 = vst [vmem:[%s223 + $0x28] sm:$0xff] %v884
        %919 = vst [vmem:[%s223 + $0x30] sm:$0xff] %v885
        %920 = vst [vmem:[%s223 + $0x38] sm:$0xff] %v886
        %921 = vst [vmem:[%s223 + $0x40] sm:$0xff] %v887
        %922 = vst [vmem:[%s223 + $0x48] sm:$0xff] %v888
        %923 = vst [vmem:[%s223 + $0x50] sm:$0xff] %v889
        %924 = vst [vmem:[%s223 + $0x58] sm:$0xff] %v890
        %925 = vst [vmem:[%s223 + $0x60] sm:$0xff] %v891
        %926 = vst [vmem:[%s223 + $0x68] sm:$0xff] %v892
        %927 = vst [vmem:[%s223 + $0x70] sm:$0xff] %v893
        %928 = vst [vmem:[%s223 + $0x78] sm:$0xff] %v894
      $region44: #{_lambda_.1} parent=35 // pred_fallthru
        _
      %p929 = scmp.eq.s32.totalorder %s442, 1
      // Predicated region
      $region45: #{_lambda_.1} parent=35 // pred_check
        %p930 = pneg %p929
      $region46: #{_lambda_.1} parent=35 // pred_check_branch
        %932 = sbr.rel (%p930) target = $region48
      $region47: #{_lambda_.1} parent=35 // pred_region
        %v933 = vld [vmem:[#allocation3] sm:$0xff]
        %v934 = vld [vmem:[#allocation3 + $0x8] sm:$0xff]
        %v935 = vld [vmem:[#allocation3 + $0x10] sm:$0xff]
        %v936 = vld [vmem:[#allocation3 + $0x18] sm:$0xff]
        %v937 = vld [vmem:[#allocation3 + $0x20] sm:$0xff]
        %v938 = vld [vmem:[#allocation3 + $0x28] sm:$0xff]
        %v939 = vld [vmem:[#allocation3 + $0x30] sm:$0xff]
        %v940 = vld [vmem:[#allocation3 + $0x38] sm:$0xff]
        %v941 = vld [vmem:[#allocation3 + $0x40] sm:$0xff]
        %v942 = vld [vmem:[#allocation3 + $0x48] sm:$0xff]
        %v943 = vld [vmem:[#allocation3 + $0x50] sm:$0xff]
        %v944 = vld [vmem:[#allocation3 + $0x58] sm:$0xff]
        %v945 = vld [vmem:[#allocation3 + $0x60] sm:$0xff]
        %v946 = vld [vmem:[#allocation3 + $0x68] sm:$0xff]
        %v947 = vld [vmem:[#allocation3 + $0x70] sm:$0xff]
        %v948 = vld [vmem:[#allocation3 + $0x78] sm:$0xff]
        %s949 = sshra.s32 %s226, 4
        %s950 = sand.u32 %s226, 15
        %s951 = smul.addr %s949, 8
        %s952 = scalar_lea.vmem [#allocation3], %s951
        %v953 = vld [vmem:[%s952] sm:$0xff]
        %v954 = vld [vmem:[%s952 + $0x8] sm:$0xff]
        %v955 = vld [vmem:[%s952 + $0x10] sm:$0xff]
        %v956 = vld [vmem:[%s952 + $0x18] sm:$0xff]
        %v957 = vld [vmem:[%s952 + $0x20] sm:$0xff]
        %v958 = vld [vmem:[%s952 + $0x28] sm:$0xff]
        %v959 = vld [vmem:[%s952 + $0x30] sm:$0xff]
        %v960 = vld [vmem:[%s952 + $0x38] sm:$0xff]
        %v977 = vunpack.c.l.b16 %v382
        %v978 = vunpack.c.h.b16 %v382
        %v979 = vunpack.c.l.b16 %v383
        %v980 = vunpack.c.h.b16 %v383
        %v981 = vunpack.c.l.b16 %v384
        %v982 = vunpack.c.h.b16 %v384
        %v983 = vunpack.c.l.b16 %v385
        %v984 = vunpack.c.h.b16 %v385
        %v985 = vunpack.c.l.b16 %v386
        %v986 = vunpack.c.h.b16 %v386
        %v987 = vunpack.c.l.b16 %v387
        %v988 = vunpack.c.h.b16 %v387
        %v989 = vunpack.c.l.b16 %v388
        %v990 = vunpack.c.h.b16 %v388
        %v991 = vunpack.c.l.b16 %v389
        %v992 = vunpack.c.h.b16 %v389
        %v993 = vunpack.c.l.b16 %v390
        %v994 = vunpack.c.h.b16 %v390
        %v995 = vunpack.c.l.b16 %v391
        %v996 = vunpack.c.h.b16 %v391
        %v997 = vunpack.c.l.b16 %v392
        %v998 = vunpack.c.h.b16 %v392
        %v999 = vunpack.c.l.b16 %v393
        %v1000 = vunpack.c.h.b16 %v393
        %v1001 = vunpack.c.l.b16 %v394
        %v1002 = vunpack.c.h.b16 %v394
        %v1003 = vunpack.c.l.b16 %v395
        %v1004 = vunpack.c.h.b16 %v395
        %v1005 = vunpack.c.l.b16 %v396
        %v1006 = vunpack.c.h.b16 %v396
        %v1007 = vunpack.c.l.b16 %v397
        %v1008 = vunpack.c.h.b16 %v397
        %v1009 = vpack.c.b16 %v979, %v977
        %v1010 = vpack.c.b16 %v980, %v978
        %v1011 = vpack.c.b16 %v983, %v981
        %v1012 = vpack.c.b16 %v984, %v982
        %v1013 = vpack.c.b16 %v987, %v985
        %v1014 = vpack.c.b16 %v988, %v986
        %v1015 = vpack.c.b16 %v991, %v989
        %v1016 = vpack.c.b16 %v992, %v990
        %v1017 = vpack.c.b16 %v995, %v993
        %v1018 = vpack.c.b16 %v996, %v994
        %v1019 = vpack.c.b16 %v999, %v997
        %v1020 = vpack.c.b16 %v1000, %v998
        %v1021 = vpack.c.b16 %v1003, %v1001
        %v1022 = vpack.c.b16 %v1004, %v1002
        %v1023 = vpack.c.b16 %v1007, %v1005
        %v1024 = vpack.c.b16 %v1008, %v1006
        %1041 = vmatprep.subr.bf16.mxu0 0
        %1042 = vmatpush1.bf16.msra.mxu0 %v933
        %1043 = vmatprep.subr.bf16.mxu0 0
        %1044 = vmatpush1.bf16.msra.mxu0 %v934
        %1045 = vmatprep.subr.bf16.mxu0 0
        %1046 = vmatpush1.bf16.msra.mxu0 %v935
        %1047 = vmatprep.subr.bf16.mxu0 0
        %1048 = vmatpush1.bf16.msra.mxu0 %v936
        %1049 = vmatprep.subr.bf16.mxu0 0
        %1050 = vmatpush1.bf16.msra.mxu0 %v937
        %1051 = vmatprep.subr.bf16.mxu0 0
        %1052 = vmatpush1.bf16.msra.mxu0 %v938
        %1053 = vmatprep.subr.bf16.mxu0 0
        %1054 = vmatpush1.bf16.msra.mxu0 %v939
        %1055 = vmatprep.subr.bf16.mxu0 0
        %1056 = vmatpush1.bf16.msra.mxu0 %v940
        %1057 = vmatprep.subr.bf16.mxu0 0
        %1058 = vmatpush1.bf16.msra.mxu0 %v941
        %1059 = vmatprep.subr.bf16.mxu0 0
        %1060 = vmatpush1.bf16.msra.mxu0 %v942
        %1061 = vmatprep.subr.bf16.mxu0 0
        %1062 = vmatpush1.bf16.msra.mxu0 %v943
        %1063 = vmatprep.subr.bf16.mxu0 0
        %1064 = vmatpush1.bf16.msra.mxu0 %v944
        %1065 = vmatprep.subr.bf16.mxu0 0
        %1066 = vmatpush1.bf16.msra.mxu0 %v945
        %1067 = vmatprep.subr.bf16.mxu0 0
        %1068 = vmatpush1.bf16.msra.mxu0 %v946
        %1069 = vmatprep.subr.bf16.mxu0 0
        %1070 = vmatpush1.bf16.msra.mxu0 %v947
        %1071 = vmatprep.subr.bf16.mxu0 0
        %1072 = vmatpush1.bf16.msra.mxu0 %v948
        %1073 = vmatprep.mubr.bf16.mxu0 %v1010
        %1074 = vmatmul.mubr.bf16.gmra.mrb[0].mxu0 %v1009
        %v1075 = vpop.f32.mrb[0].mxu0
        %v1076 = vadd.f32 0.0, %v1075
        %v1077 = vpop.f32.mrb[0].mxu0
        %v1078 = vpop.f32.mrb[0].mxu0
        %v1079 = vadd.f32 0.0, %v1078
        %v1080 = vpop.f32.mrb[0].mxu0
        %1081 = vmatprep.mubr.bf16.mxu0 %v1012
        %1082 = vmatmul.mubr.bf16.gmra.mrb[0].mxu0 %v1011
        %v1083 = vpop.f32.mrb[0].mxu0
        %v1084 = vadd.f32 0.0, %v1083
        %v1085 = vpop.f32.mrb[0].mxu0
        %v1086 = vpop.f32.mrb[0].mxu0
        %v1087 = vadd.f32 0.0, %v1086
        %v1088 = vpop.f32.mrb[0].mxu0
        %1089 = vmatprep.mubr.bf16.mxu0 %v1014
        %1090 = vmatmul.mubr.bf16.gmra.mrb[0].mxu0 %v1013
        %v1091 = vpop.f32.mrb[0].mxu0
        %v1092 = vadd.f32 0.0, %v1091
        %v1093 = vpop.f32.mrb[0].mxu0
        %v1094 = vpop.f32.mrb[0].mxu0
        %v1095 = vadd.f32 0.0, %v1094
        %v1096 = vpop.f32.mrb[0].mxu0
        %1097 = vmatprep.mubr.bf16.mxu0 %v1016
        %1098 = vmatmul.mubr.bf16.gmra.mrb[0].mxu0 %v1015
        %v1099 = vpop.f32.mrb[0].mxu0
        %v1100 = vadd.f32 0.0, %v1099
        %v1101 = vpop.f32.mrb[0].mxu0
        %v1102 = vpop.f32.mrb[0].mxu0
        %v1103 = vadd.f32 0.0, %v1102
        %v1104 = vpop.f32.mrb[0].mxu0
        %1105 = vmatprep.mubr.bf16.mxu0 %v1018
        %1106 = vmatmul.mubr.bf16.gmra.mrb[0].mxu0 %v1017
        %v1107 = vpop.f32.mrb[0].mxu0
        %v1108 = vadd.f32 0.0, %v1107
        %v1109 = vpop.f32.mrb[0].mxu0
        %v1110 = vpop.f32.mrb[0].mxu0
        %v1111 = vadd.f32 0.0, %v1110
        %v1112 = vpop.f32.mrb[0].mxu0
        %1113 = vmatprep.mubr.bf16.mxu0 %v1020
        %1114 = vmatmul.mubr.bf16.gmra.mrb[0].mxu0 %v1019
        %v1115 = vpop.f32.mrb[0].mxu0
        %v1116 = vadd.f32 0.0, %v1115
        %v1117 = vpop.f32.mrb[0].mxu0
        %v1118 = vpop.f32.mrb[0].mxu0
        %v1119 = vadd.f32 0.0, %v1118
        %v1120 = vpop.f32.mrb[0].mxu0
        %1121 = vmatprep.mubr.bf16.mxu0 %v1022
        %1122 = vmatmul.mubr.bf16.gmra.mrb[0].mxu0 %v1021
        %v1123 = vpop.f32.mrb[0].mxu0
        %v1124 = vadd.f32 0.0, %v1123
        %v1125 = vpop.f32.mrb[0].mxu0
        %v1126 = vpop.f32.mrb[0].mxu0
        %v1127 = vadd.f32 0.0, %v1126
        %v1128 = vpop.f32.mrb[0].mxu0
        %1129 = vmatprep.mubr.bf16.mxu0 %v1024
        %1130 = vmatmul.mubr.bf16.gmra.mrb[0].mxu0 %v1023
        %v1131 = vpop.f32.mrb[0].mxu0
        %v1132 = vadd.f32 0.0, %v1131
        %v1133 = vpop.f32.mrb[0].mxu0
        %v1134 = vpop.f32.mrb[0].mxu0
        %v1135 = vadd.f32 0.0, %v1134
        %v1136 = vpop.f32.mrb[0].mxu0
        %1137 = vdwg.mxu0
        %v1138 = vpack.c.bf16 %v1079, %v1076
        %v1139 = vpack.c.bf16 %v1087, %v1084
        %v1140 = vpack.c.bf16 %v1095, %v1092
        %v1141 = vpack.c.bf16 %v1103, %v1100
        %v1142 = vpack.c.bf16 %v1111, %v1108
        %v1143 = vpack.c.bf16 %v1119, %v1116
        %v1144 = vpack.c.bf16 %v1127, %v1124
        %v1145 = vpack.c.bf16 %v1135, %v1132
        %v1147 = vlaneseq
        %v1148 = vshrl.u32 %v1147, 7
        %v1149 = vsub.s32 0, %v1148
        %v1150 = vrot.slane %v430, %v1149
        %v1184 = vunpack.c.l.b16 %v398
        %v1185 = vunpack.c.l.b16 %v399
        %v1186 = vunpack.c.l.b16 %v400
        %v1187 = vunpack.c.l.b16 %v401
        %v1188 = vunpack.c.l.b16 %v402
        %v1189 = vunpack.c.l.b16 %v403
        %v1190 = vunpack.c.l.b16 %v404
        %v1191 = vunpack.c.l.b16 %v405
        %v1192 = vunpack.c.l.b16 %v406
        %v1193 = vunpack.c.l.b16 %v407
        %v1194 = vunpack.c.l.b16 %v408
        %v1195 = vunpack.c.l.b16 %v409
        %v1196 = vunpack.c.l.b16 %v410
        %v1197 = vunpack.c.l.b16 %v411
        %v1198 = vunpack.c.l.b16 %v412
        %v1199 = vunpack.c.l.b16 %v413
        %v1200 = vunpack.c.l.b16 %v414
        %v1201 = vunpack.c.l.b16 %v415
        %v1202 = vunpack.c.l.b16 %v416
        %v1203 = vunpack.c.l.b16 %v417
        %v1204 = vunpack.c.l.b16 %v418
        %v1205 = vunpack.c.l.b16 %v419
        %v1206 = vunpack.c.l.b16 %v420
        %v1207 = vunpack.c.l.b16 %v421
        %v1208 = vunpack.c.l.b16 %v422
        %v1209 = vunpack.c.l.b16 %v423
        %v1210 = vunpack.c.l.b16 %v424
        %v1211 = vunpack.c.l.b16 %v425
        %v1212 = vunpack.c.l.b16 %v426
        %v1213 = vunpack.c.l.b16 %v427
        %v1214 = vunpack.c.l.b16 %v428
        %v1215 = vunpack.c.l.b16 %v429
        %v1216 = vpack.c.b16 %v1185, %v1184
        %v1217 = vpack.c.b16 %v1187, %v1186
        %v1218 = vpack.c.b16 %v1189, %v1188
        %v1219 = vpack.c.b16 %v1191, %v1190
        %v1220 = vpack.c.b16 %v1193, %v1192
        %v1221 = vpack.c.b16 %v1195, %v1194
        %v1222 = vpack.c.b16 %v1197, %v1196
        %v1223 = vpack.c.b16 %v1199, %v1198
        %v1224 = vpack.c.b16 %v1201, %v1200
        %v1225 = vpack.c.b16 %v1203, %v1202
        %v1226 = vpack.c.b16 %v1205, %v1204
        %v1227 = vpack.c.b16 %v1207, %v1206
        %v1228 = vpack.c.b16 %v1209, %v1208
        %v1229 = vpack.c.b16 %v1211, %v1210
        %v1230 = vpack.c.b16 %v1213, %v1212
        %v1231 = vpack.c.b16 %v1215, %v1214
        %1248 = vmatprep.subr.bf16.mxu0 0
        %1249 = vmatpush1.bf16.msra.mxu0 %v1216
        %1250 = vmatprep.subr.bf16.mxu0 0
        %1251 = vmatpush1.bf16.msra.mxu0 %v1217
        %1252 = vmatprep.subr.bf16.mxu0 0
        %1253 = vmatpush1.bf16.msra.mxu0 %v1218
        %1254 = vmatprep.subr.bf16.mxu0 0
        %1255 = vmatpush1.bf16.msra.mxu0 %v1219
        %1256 = vmatprep.subr.bf16.mxu0 0
        %1257 = vmatpush1.bf16.msra.mxu0 %v1220
        %1258 = vmatprep.subr.bf16.mxu0 0
        %1259 = vmatpush1.bf16.msra.mxu0 %v1221
        %1260 = vmatprep.subr.bf16.mxu0 0
        %1261 = vmatpush1.bf16.msra.mxu0 %v1222
        %1262 = vmatprep.subr.bf16.mxu0 0
        %1263 = vmatpush1.bf16.msra.mxu0 %v1223
        %1264 = vmatprep.subr.bf16.mxu0 0
        %1265 = vmatpush1.bf16.msra.mxu0 %v1224
        %1266 = vmatprep.subr.bf16.mxu0 0
        %1267 = vmatpush1.bf16.msra.mxu0 %v1225
        %1268 = vmatprep.subr.bf16.mxu0 0
        %1269 = vmatpush1.bf16.msra.mxu0 %v1226
        %1270 = vmatprep.subr.bf16.mxu0 0
        %1271 = vmatpush1.bf16.msra.mxu0 %v1227
        %1272 = vmatprep.subr.bf16.mxu0 0
        %1273 = vmatpush1.bf16.msra.mxu0 %v1228
        %1274 = vmatprep.subr.bf16.mxu0 0
        %1275 = vmatpush1.bf16.msra.mxu0 %v1229
        %1276 = vmatprep.subr.bf16.mxu0 0
        %1277 = vmatpush1.bf16.msra.mxu0 %v1230
        %1278 = vmatprep.subr.bf16.mxu0 0
        %1279 = vmatpush1.bf16.msra.mxu0 %v1231
        %1280 = vmatprep.mubr.bf16.mxu0 %v1138
        %1281 = vmatmul.mubr.bf16.gmra.mrb[0].mxu0 %v953
        %v1282 = vpop.f32.mrb[0].mxu0
        %v1283 = vadd.f32 %v1150, %v1282
        %v1284 = vpop.f32.mrb[0].mxu0
        %v1285 = vpop.f32.mrb[0].mxu0
        %v1286 = vadd.f32 %v1150, %v1285
        %v1287 = vpop.f32.mrb[0].mxu0
        %1288 = vmatprep.mubr.bf16.mxu0 %v1139
        %1289 = vmatmul.mubr.bf16.gmra.mrb[0].mxu0 %v954
        %v1290 = vpop.f32.mrb[0].mxu0
        %v1291 = vadd.f32 %v1150, %v1290
        %v1292 = vpop.f32.mrb[0].mxu0
        %v1293 = vpop.f32.mrb[0].mxu0
        %v1294 = vadd.f32 %v1150, %v1293
        %v1295 = vpop.f32.mrb[0].mxu0
        %1296 = vmatprep.mubr.bf16.mxu0 %v1140
        %1297 = vmatmul.mubr.bf16.gmra.mrb[0].mxu0 %v955
        %v1298 = vpop.f32.mrb[0].mxu0
        %v1299 = vadd.f32 %v1150, %v1298
        %v1300 = vpop.f32.mrb[0].mxu0
        %v1301 = vpop.f32.mrb[0].mxu0
        %v1302 = vadd.f32 %v1150, %v1301
        %v1303 = vpop.f32.mrb[0].mxu0
        %1304 = vmatprep.mubr.bf16.mxu0 %v1141
        %1305 = vmatmul.mubr.bf16.gmra.mrb[0].mxu0 %v956
        %v1306 = vpop.f32.mrb[0].mxu0
        %v1307 = vadd.f32 %v1150, %v1306
        %v1308 = vpop.f32.mrb[0].mxu0
        %v1309 = vpop.f32.mrb[0].mxu0
        %v1310 = vadd.f32 %v1150, %v1309
        %v1311 = vpop.f32.mrb[0].mxu0
        %1312 = vmatprep.mubr.bf16.mxu0 %v1142
        %1313 = vmatmul.mubr.bf16.gmra.mrb[0].mxu0 %v957
        %v1314 = vpop.f32.mrb[0].mxu0
        %v1315 = vadd.f32 %v1150, %v1314
        %v1316 = vpop.f32.mrb[0].mxu0
        %v1317 = vpop.f32.mrb[0].mxu0
        %v1318 = vadd.f32 %v1150, %v1317
        %v1319 = vpop.f32.mrb[0].mxu0
        %1320 = vmatprep.mubr.bf16.mxu0 %v1143
        %1321 = vmatmul.mubr.bf16.gmra.mrb[0].mxu0 %v958
        %v1322 = vpop.f32.mrb[0].mxu0
        %v1323 = vadd.f32 %v1150, %v1322
        %v1324 = vpop.f32.mrb[0].mxu0
        %v1325 = vpop.f32.mrb[0].mxu0
        %v1326 = vadd.f32 %v1150, %v1325
        %v1327 = vpop.f32.mrb[0].mxu0
        %1328 = vmatprep.mubr.bf16.mxu0 %v1144
        %1329 = vmatmul.mubr.bf16.gmra.mrb[0].mxu0 %v959
        %v1330 = vpop.f32.mrb[0].mxu0
        %v1331 = vadd.f32 %v1150, %v1330
        %v1332 = vpop.f32.mrb[0].mxu0
        %v1333 = vpop.f32.mrb[0].mxu0
        %v1334 = vadd.f32 %v1150, %v1333
        %v1335 = vpop.f32.mrb[0].mxu0
        %1336 = vmatprep.mubr.bf16.mxu0 %v1145
        %1337 = vmatmul.mubr.bf16.gmra.mrb[0].mxu0 %v960
        %v1338 = vpop.f32.mrb[0].mxu0
        %v1339 = vadd.f32 %v1150, %v1338
        %v1340 = vpop.f32.mrb[0].mxu0
        %v1341 = vpop.f32.mrb[0].mxu0
        %v1342 = vadd.f32 %v1150, %v1341
        %v1343 = vpop.f32.mrb[0].mxu0
        %1344 = vdwg.mxu0
        %p1345 = scmp.lt.s32.totalorder %s19, 2
        %v1346 = vmax.f32 %v1283, 0.0
        %v1347 = vmax.f32 %v1286, 0.0
        %v1348 = vmax.f32 %v1291, 0.0
        %v1349 = vmax.f32 %v1294, 0.0
        %v1350 = vmax.f32 %v1299, 0.0
        %v1351 = vmax.f32 %v1302, 0.0
        %v1352 = vmax.f32 %v1307, 0.0
        %v1353 = vmax.f32 %v1310, 0.0
        %v1354 = vmax.f32 %v1315, 0.0
        %v1355 = vmax.f32 %v1318, 0.0
        %v1356 = vmax.f32 %v1323, 0.0
        %v1357 = vmax.f32 %v1326, 0.0
        %v1358 = vmax.f32 %v1331, 0.0
        %v1359 = vmax.f32 %v1334, 0.0
        %v1360 = vmax.f32 %v1339, 0.0
        %v1361 = vmax.f32 %v1342, 0.0
        %s1362 = scalar_select %p1345, 1, 0
        %v1363 = vstv %s1362
        %vm1364 = vcmp.eq.s32.totalorder %v1363, 1
        %v1365 = vsel %vm1364, %v1346, %v1283
        %v1366 = vsel %vm1364, %v1347, %v1286
        %v1367 = vsel %vm1364, %v1348, %v1291
        %v1368 = vsel %vm1364, %v1349, %v1294
        %v1369 = vsel %vm1364, %v1350, %v1299
        %v1370 = vsel %vm1364, %v1351, %v1302
        %v1371 = vsel %vm1364, %v1352, %v1307
        %v1372 = vsel %vm1364, %v1353, %v1310
        %v1373 = vsel %vm1364, %v1354, %v1315
        %v1374 = vsel %vm1364, %v1355, %v1318
        %v1375 = vsel %vm1364, %v1356, %v1323
        %v1376 = vsel %vm1364, %v1357, %v1326
        %v1377 = vsel %vm1364, %v1358, %v1331
        %v1378 = vsel %vm1364, %v1359, %v1334
        %v1379 = vsel %vm1364, %v1360, %v1339
        %v1380 = vsel %vm1364, %v1361, %v1342
        %v1381 = vpack.c.bf16 %v1366, %v1365
        %v1382 = vpack.c.bf16 %v1368, %v1367
        %v1383 = vpack.c.bf16 %v1370, %v1369
        %v1384 = vpack.c.bf16 %v1372, %v1371
        %v1385 = vpack.c.bf16 %v1374, %v1373
        %v1386 = vpack.c.bf16 %v1376, %v1375
        %v1387 = vpack.c.bf16 %v1378, %v1377
        %v1388 = vpack.c.bf16 %v1380, %v1379
        %s1389 = smul.addr %s949, 8
        %s1390 = scalar_lea.vmem [#allocation2], %s1389
        %1391 = vst [vmem:[%s1390] sm:$0xff] %v1381
        %1392 = vst [vmem:[%s1390 + $0x8] sm:$0xff] %v1382
        %1393 = vst [vmem:[%s1390 + $0x10] sm:$0xff] %v1383
        %1394 = vst [vmem:[%s1390 + $0x18] sm:$0xff] %v1384
        %1395 = vst [vmem:[%s1390 + $0x20] sm:$0xff] %v1385
        %1396 = vst [vmem:[%s1390 + $0x28] sm:$0xff] %v1386
        %1397 = vst [vmem:[%s1390 + $0x30] sm:$0xff] %v1387
        %1398 = vst [vmem:[%s1390 + $0x38] sm:$0xff] %v1388
        %1399 = vst [vmem:[%s223] sm:$0xff] %v1365
        %1400 = vst [vmem:[%s223 + $0x8] sm:$0xff] %v1366
        %1401 = vst [vmem:[%s223 + $0x10] sm:$0xff] %v1367
        %1402 = vst [vmem:[%s223 + $0x18] sm:$0xff] %v1368
        %1403 = vst [vmem:[%s223 + $0x20] sm:$0xff] %v1369
        %1404 = vst [vmem:[%s223 + $0x28] sm:$0xff] %v1370
        %1405 = vst [vmem:[%s223 + $0x30] sm:$0xff] %v1371
        %1406 = vst [vmem:[%s223 + $0x38] sm:$0xff] %v1372
        %1407 = vst [vmem:[%s223 + $0x40] sm:$0xff] %v1373
        %1408 = vst [vmem:[%s223 + $0x48] sm:$0xff] %v1374
        %1409 = vst [vmem:[%s223 + $0x50] sm:$0xff] %v1375
        %1410 = vst [vmem:[%s223 + $0x58] sm:$0xff] %v1376
        %1411 = vst [vmem:[%s223 + $0x60] sm:$0xff] %v1377
        %1412 = vst [vmem:[%s223 + $0x68] sm:$0xff] %v1378
        %1413 = vst [vmem:[%s223 + $0x70] sm:$0xff] %v1379
        %1414 = vst [vmem:[%s223 + $0x78] sm:$0xff] %v1380
      $region48: #{_lambda_.1} parent=35 // pred_fallthru
        _
      %s1415 = smul.u32 16, %s20
      %p1416 = scmp.lt.s32.totalorder %s1415, 31
      %s1417 = scalar_select %p1416, %s1415, 31
      %s1418 = smul.addr %s1417, 8
      %s1419 = scalar_lea.vmem %s4, %s1418
      // Predicated region
      $region49: #{_lambda_.1} parent=35 // pred_check
        %p1420 = pneg %p139
      $region50: #{_lambda_.1} parent=35 // pred_check_branch
        %1422 = sbr.rel (%p1420) target = $region52
      $region51: #{_lambda_.1} parent=35 // pred_region
        %s1423 = smul.u32 16, %s20
      $region52: #{_lambda_.1} parent=35 // pred_fallthru
        _
    $region36: #{_lambda_.1} parent=5 // pred_fallthru
      _
    %p1424 = scmp.le.s32.totalorder 2, %s10
    // Predicated region
    $region53: #{_lambda_.1} parent=5 // pred_check
      %p1425 = pneg %p1424
    $region54: #{_lambda_.1} parent=5 // pred_check_branch
      %1427 = sbr.rel (%p1425) target = $region56
    $region55: #{_lambda_.1} parent=5 // pred_region
      %s1428 = ssub.s32 %s10, 2
      // Predicated region
      $region57: #{_lambda_.1} parent=55 // pred_check
        %p1429 = pneg %p145
      $region58: #{_lambda_.1} parent=55 // pred_check_branch
        %1431 = sbr.rel (%p1429) target = $region60
      $region59: #{_lambda_.1} parent=55 // pred_region
        %s1432 = smul.u32 16, %s22
        %p1433 = scmp.lt.s32.totalorder %s1432, 31
        %s1434 = scalar_select %p1433, %s1432, 31
        %s1435 = smul.addr %s1434, 8
        %s1436 = scalar_lea.vmem %s4, %s1435
      $region60: #{_lambda_.1} parent=55 // pred_fallthru
        _
    $region56: #{_lambda_.1} parent=5 // pred_fallthru
      _
  $region6: #{_lambda_.1} parent=0 // loop_footer
    %s14 = sadd.s32 1, %s10
  $region7: #{_lambda_.1} parent=0 // loop_footer_branch
    %9 = sbr.rel target = $region3
  $region8: #{_lambda_.1} parent=0 // loop_exit
    _

</llo_original>
